<compile_context>
chip_gen: v6e
topology: v6e:2x2x1
jax: 0.10.0
libtpu: 0.0.40
codegen_flags: <defaults>
</compile_context>

<pallas_src>
import jax
import jax.numpy as jnp
from jax import lax
from jax.experimental import pallas as pl
from jax.experimental.pallas import tpu as pltpu


def lstm_predictor_kernel(samples_ref, emb_ref, wih_ref, bias_ref, whh_ref,
                          fcw_ref, fcb_ref, out_ref, embproj_ref, xw_ref):
    """Fused embedding gather + input projection + LSTM recurrence + FC + sigmoid.

    samples_ref : [T*B]   int32 (SMEM)  -- time-major, flattened
    emb_ref     : [S, H]  f32   (VMEM)  -- embedding table
    wih_ref     : [H, 4H] f32   (VMEM)  -- W_ih^T (g columns pre-scaled by 2)
    bias_ref    : [1, 4H] f32   (VMEM)  -- b_ih + b_hh (g block pre-scaled by 2)
    whh_ref     : [H, 4H] bf16  (VMEM)  -- W_hh^T (g columns pre-scaled by 2)
    fcw_ref     : [1, H]  f32   (VMEM)  -- fc weight (row vector)
    fcb_ref     : [1]     f32   (SMEM)  -- fc bias
    out_ref     : [B, 1]  f32   (VMEM)  -- sigmoid(fc(h_T))
    embproj_ref : [S, 4H] f32   (VMEM scratch)  -- emb @ W_ih^T + bias
    xw_ref      : [T*B, 4H] f32 (VMEM scratch)  -- gathered per-step inputs
    """
    S, H = emb_ref.shape
    TB, G = xw_ref.shape            # G == 4H
    B = out_ref.shape[0]
    T = TB // B

    # ---- Prologue (off the serial recurrence chain) ------------------------
    # Fold the input projection into the tiny embedding table once:
    #   embproj[v] = emb[v] @ W_ih^T + (b_ih + b_hh)     (g block scaled by 2)
    embproj_ref[...] = (
        jnp.dot(emb_ref[...], wih_ref[...], preferred_element_type=jnp.float32)
        + bias_ref[...])

    # Gather the projected inputs for all T*B (timestep, batch) rows using
    # scalar SMEM indices -> dynamic-row VMEM loads (static unroll, tiny).
    for idx in range(TB):
        xw_ref[idx, :] = embproj_ref[samples_ref[idx], :]

    # Recurrent weights loaded once (bf16 for a single-pass MXU matmul).
    whh = whh_ref[...]              # [H, 4H] bf16

    # ---- Serial LSTM recurrence --------------------------------------------
    # Gate order matches PyTorch: i, f, g, o.  Because the g columns of all
    # weights/bias were pre-scaled by 2, a single full-width sigmoid gives the
    # i/f/o gates directly and tanh(z_g) = 2*sigmoid(2*z_g) - 1 for the g gate.
    def step(t, carry):
        h, c = carry
        xw_t = xw_ref[pl.ds(t * B, B), :]                         # [B, 4H]
        gates = xw_t + jnp.dot(h.astype(whh.dtype), whh,
                               preferred_element_type=jnp.float32)
        s = jax.nn.sigmoid(gates)                                  # one EUP pass
        i_g = s[:, 0 * H:1 * H]
        f_g = s[:, 1 * H:2 * H]
        g_g = 2.0 * s[:, 2 * H:3 * H] - 1.0                        # == tanh(z_g)
        o_g = s[:, 3 * H:4 * H]
        c_new = f_g * c + i_g * g_g
        h_new = o_g * jnp.tanh(c_new)
        return h_new, c_new

    h0 = jnp.zeros((B, H), jnp.float32)
    c0 = jnp.zeros((B, H), jnp.float32)
    h_final, _ = lax.fori_loop(0, T, step, (h0, c0), unroll=True)

    # ---- Final FC + sigmoid (VPU multiply + lane reduce; no N=1 MXU op) ----
    logit = (jnp.sum(h_final * fcw_ref[...], axis=-1, keepdims=True)
             + fcb_ref[0])                                         # [B, 1]
    out_ref[...] = jax.nn.sigmoid(logit)


def accuracy_predictor_forward(samples, params):
    """samples: [T, B] int32 (time-major, matching torch.nn.LSTM).

    Returns sigmoid predictions, squeezed ([B] for B > 1), matching the
    torch.squeeze semantics of the reference module."""
    emb = params["embedding"].astype(jnp.float32)        # [S, H]
    T, B = samples.shape
    S, H = emb.shape
    G = 4 * H

    # Parameter prep (weight folding; cached alongside the params in practice).
    # Pre-scale the g-gate (cell candidate) block by 2 so the kernel can use a
    # single sigmoid and the identity tanh(z) = 2*sigmoid(2z) - 1.
    g_scale = jnp.ones((G,), jnp.float32).at[2 * H:3 * H].set(2.0)
    wih_t = (params["w_ih"].astype(jnp.float32).T * g_scale[None, :])       # [H, 4H]
    bias = ((params["b_ih"] + params["b_hh"]).astype(jnp.float32)
            * g_scale).reshape(1, G)                                        # [1, 4H]
    whh_t = (params["w_hh"].astype(jnp.float32).T
             * g_scale[None, :]).astype(jnp.bfloat16)                       # [H, 4H]
    fcw = params["fc_w"].astype(jnp.float32)                                # [1, H]
    fcb = params["fc_b"].astype(jnp.float32)                                # [1]

    samples_flat = samples.reshape(T * B).astype(jnp.int32)                 # [T*B]

    out = pl.pallas_call(
        lstm_predictor_kernel,
        out_shape=jax.ShapeDtypeStruct((B, 1), jnp.float32),
        # No grid: single invocation, everything resident in VMEM/SMEM
        # (footprint ~20 KiB); the serial time loop lives inside the kernel.
        in_specs=[
            pl.BlockSpec(memory_space=pltpu.MemorySpace.SMEM),   # samples
            pl.BlockSpec(memory_space=pltpu.MemorySpace.VMEM),   # embedding
            pl.BlockSpec(memory_space=pltpu.MemorySpace.VMEM),   # W_ih^T
            pl.BlockSpec(memory_space=pltpu.MemorySpace.VMEM),   # bias
            pl.BlockSpec(memory_space=pltpu.MemorySpace.VMEM),   # W_hh^T (bf16)
            pl.BlockSpec(memory_space=pltpu.MemorySpace.VMEM),   # fc weight
            pl.BlockSpec(memory_space=pltpu.MemorySpace.SMEM),   # fc bias
        ],
        out_specs=pl.BlockSpec(memory_space=pltpu.MemorySpace.VMEM),
        scratch_shapes=[
            pltpu.VMEM((S, G), jnp.float32),        # projected embedding table
            pltpu.VMEM((T * B, G), jnp.float32),    # gathered per-step inputs
        ],
    )(samples_flat, emb, wih_t, bias, whh_t, fcw, fcb)

    return jnp.squeeze(out)


def reference_forward(samples, params):
    """Pure-JAX f32 reference of the PyTorch forward for verification."""
    emb = params["embedding"]
    x = emb[samples]                                   # [T, B, H]
    H = emb.shape[1]
    w_ih, w_hh = params["w_ih"], params["w_hh"]
    b = params["b_ih"] + params["b_hh"]

    def step(carry, xt):
        h, c = carry
        gates = xt @ w_ih.T + h @ w_hh.T + b
        i = jax.nn.sigmoid(gates[:, 0 * H:1 * H])
        f = jax.nn.sigmoid(gates[:, 1 * H:2 * H])
        g = jnp.tanh(gates[:, 2 * H:3 * H])
        o = jax.nn.sigmoid(gates[:, 3 * H:4 * H])
        c = f * c + i * g
        h = o * jnp.tanh(c)
        return (h, c), None

    B = samples.shape[1]
    (h, _), _ = jax.lax.scan(step, (jnp.zeros((B, H)), jnp.zeros((B, H))), x)
    logit = h @ params["fc_w"].T + params["fc_b"]
    return jnp.squeeze(jax.nn.sigmoid(logit))


def make_params(key, search_size, hidden_size):
    """Deterministic synthetic parameters (PyTorch-style uniform init ranges)."""
    H = hidden_size
    ks = jax.random.split(key, 7)
    k = 1.0 / jnp.sqrt(H)
    return {
        "embedding": jax.random.normal(ks[0], (search_size, H), jnp.float32),
        "w_ih": jax.random.uniform(ks[1], (4 * H, H), jnp.float32, -k, k),
        "w_hh": jax.random.uniform(ks[2], (4 * H, H), jnp.float32, -k, k),
        "b_ih": jax.random.uniform(ks[3], (4 * H,), jnp.float32, -k, k),
        "b_hh": jax.random.uniform(ks[4], (4 * H,), jnp.float32, -k, k),
        "fc_w": jax.random.uniform(ks[5], (1, H), jnp.float32, -k, k),
        "fc_b": jax.random.uniform(ks[6], (1,), jnp.float32, -k, k),
    }


if __name__ == "__main__":
    search_size = 10
    hidden_size = 32     # 4H = 128 -> gate vector exactly fills one vreg lane-width
    T, B = 8, 2          # seq length, batch (B up to 8 rides in the same sublanes)

    key = jax.random.PRNGKey(0)
    k_params, k_samples = jax.random.split(key)
    params = make_params(k_params, search_size, hidden_size)

    samples = jax.random.randint(k_samples, (T, B), 0, search_size, jnp.int32)

    preds = accuracy_predictor_forward(samples, params)
    preds = jax.block_until_ready(preds)

    ref = reference_forward(samples, params)
    assert preds.shape == (B,)
    # Tolerance loosened vs. the pure-f32 reference because the recurrent
    # matmul feeds the MXU with bf16 operands (f32 accumulation).
    assert jnp.allclose(preds, ref, atol=2e-2, rtol=0.0), (preds, ref)

    print("KERNEL_OK")
</pallas_src>

<mosaic_0001>
module attributes {stable_mosaic.version = 11 : i64} {
  func.func @lstm_predictor_kernel(%arg0: memref<16xi32, #tpu.memory_space<smem>>, %arg1: memref<10x32xf32, #tpu.memory_space<vmem>>, %arg2: memref<32x128xf32, #tpu.memory_space<vmem>>, %arg3: memref<1x128xf32, #tpu.memory_space<vmem>>, %arg4: memref<32x128xbf16, #tpu.memory_space<vmem>>, %arg5: memref<1x32xf32, #tpu.memory_space<vmem>>, %arg6: memref<1xf32, #tpu.memory_space<smem>>, %arg7: memref<2x1xf32, #tpu.memory_space<vmem>>, %arg8: memref<10x128xf32, #tpu.memory_space<vmem>>, %arg9: memref<16x128xf32, #tpu.memory_space<vmem>>) attributes {dimension_semantics = [], scalar_prefetch = 0 : i64, scratch_operands = 2 : i64, tpu.core_type = #tpu.core_type<tc>} {
    %c0 = arith.constant 0 : index
    %c0_0 = arith.constant 0 : index
    %0 = vector.load %arg1[%c0, %c0_0] : memref<10x32xf32, #tpu.memory_space<vmem>>, vector<10x32xf32>
    %c0_1 = arith.constant 0 : index
    %c0_2 = arith.constant 0 : index
    %1 = vector.load %arg2[%c0_1, %c0_2] : memref<32x128xf32, #tpu.memory_space<vmem>>, vector<32x128xf32>
    %cst = arith.constant dense<0.000000e+00> : vector<10x128xf32>
    %2 = tpu.matmul %0, %1, %cst {dimension_numbers = #tpu.dot_dimension_numbers<[1], [0], [0], [1], [0, 0, 1, 1], [], []>} : vector<10x32xf32>, vector<32x128xf32>, vector<10x128xf32> -> vector<10x128xf32>
    %c0_3 = arith.constant 0 : index
    %c0_4 = arith.constant 0 : index
    %3 = vector.load %arg3[%c0_3, %c0_4] : memref<1x128xf32, #tpu.memory_space<vmem>>, vector<1x128xf32>
    %4 = vector.broadcast %3 : vector<1x128xf32> to vector<10x128xf32>
    %5 = arith.addf %2, %4 : vector<10x128xf32>
    %c0_5 = arith.constant 0 : index
    %c0_6 = arith.constant 0 : index
    %6 = vector.load %arg8[%c0_5, %c0_6] : memref<10x128xf32, #tpu.memory_space<vmem>>, vector<10x128xf32>
    tpu.vector_store %arg8[%c0_5, %c0_6], %5 {strides = array<i32>} : memref<10x128xf32, #tpu.memory_space<vmem>>, vector<10x128xf32>,
    %c0_7 = arith.constant 0 : index
    %7 = memref.load %arg0[%c0_7] : memref<16xi32, #tpu.memory_space<smem>>
    %8 = arith.index_cast %7 : i32 to index
    %c0_8 = arith.constant 0 : index
    %9 = vector.load %arg8[%8, %c0_8] : memref<10x128xf32, #tpu.memory_space<vmem>>, vector<1x128xf32>
    %10 = vector.shape_cast %9 : vector<1x128xf32> to vector<128xf32>
    %c0_9 = arith.constant 0 : index
    %c0_10 = arith.constant 0 : index
    %11 = vector.load %arg9[%c0_9, %c0_10] : memref<16x128xf32, #tpu.memory_space<vmem>>, vector<1x128xf32>
    %12 = vector.shape_cast %11 : vector<1x128xf32> to vector<128xf32>
    %13 = vector.shape_cast %10 : vector<128xf32> to vector<1x128xf32>
    tpu.vector_store %arg9[%c0_9, %c0_10], %13 {strides = array<i32>} : memref<16x128xf32, #tpu.memory_space<vmem>>, vector<1x128xf32>,
    %c1 = arith.constant 1 : index
    %14 = memref.load %arg0[%c1] : memref<16xi32, #tpu.memory_space<smem>>
    %15 = arith.index_cast %14 : i32 to index
    %c0_11 = arith.constant 0 : index
    %16 = vector.load %arg8[%15, %c0_11] : memref<10x128xf32, #tpu.memory_space<vmem>>, vector<1x128xf32>
    %17 = vector.shape_cast %16 : vector<1x128xf32> to vector<128xf32>
    %c1_12 = arith.constant 1 : index
    %c0_13 = arith.constant 0 : index
    %18 = vector.load %arg9[%c1_12, %c0_13] : memref<16x128xf32, #tpu.memory_space<vmem>>, vector<1x128xf32>
    %19 = vector.shape_cast %18 : vector<1x128xf32> to vector<128xf32>
    %20 = vector.shape_cast %17 : vector<128xf32> to vector<1x128xf32>
    tpu.vector_store %arg9[%c1_12, %c0_13], %20 {strides = array<i32>} : memref<16x128xf32, #tpu.memory_space<vmem>>, vector<1x128xf32>,
    %c2 = arith.constant 2 : index
    %21 = memref.load %arg0[%c2] : memref<16xi32, #tpu.memory_space<smem>>
    %22 = arith.index_cast %21 : i32 to index
    %c0_14 = arith.constant 0 : index
    %23 = vector.load %arg8[%22, %c0_14] : memref<10x128xf32, #tpu.memory_space<vmem>>, vector<1x128xf32>
    %24 = vector.shape_cast %23 : vector<1x128xf32> to vector<128xf32>
    %c2_15 = arith.constant 2 : index
    %c0_16 = arith.constant 0 : index
    %25 = vector.load %arg9[%c2_15, %c0_16] : memref<16x128xf32, #tpu.memory_space<vmem>>, vector<1x128xf32>
    %26 = vector.shape_cast %25 : vector<1x128xf32> to vector<128xf32>
    %27 = vector.shape_cast %24 : vector<128xf32> to vector<1x128xf32>
    tpu.vector_store %arg9[%c2_15, %c0_16], %27 {strides = array<i32>} : memref<16x128xf32, #tpu.memory_space<vmem>>, vector<1x128xf32>,
    %c3 = arith.constant 3 : index
    %28 = memref.load %arg0[%c3] : memref<16xi32, #tpu.memory_space<smem>>
    %29 = arith.index_cast %28 : i32 to index
    %c0_17 = arith.constant 0 : index
    %30 = vector.load %arg8[%29, %c0_17] : memref<10x128xf32, #tpu.memory_space<vmem>>, vector<1x128xf32>
    %31 = vector.shape_cast %30 : vector<1x128xf32> to vector<128xf32>
    %c3_18 = arith.constant 3 : index
    %c0_19 = arith.constant 0 : index
    %32 = vector.load %arg9[%c3_18, %c0_19] : memref<16x128xf32, #tpu.memory_space<vmem>>, vector<1x128xf32>
    %33 = vector.shape_cast %32 : vector<1x128xf32> to vector<128xf32>
    %34 = vector.shape_cast %31 : vector<128xf32> to vector<1x128xf32>
    tpu.vector_store %arg9[%c3_18, %c0_19], %34 {strides = array<i32>} : memref<16x128xf32, #tpu.memory_space<vmem>>, vector<1x128xf32>,
    %c4 = arith.constant 4 : index
    %35 = memref.load %arg0[%c4] : memref<16xi32, #tpu.memory_space<smem>>
    %36 = arith.index_cast %35 : i32 to index
    %c0_20 = arith.constant 0 : index
    %37 = vector.load %arg8[%36, %c0_20] : memref<10x128xf32, #tpu.memory_space<vmem>>, vector<1x128xf32>
    %38 = vector.shape_cast %37 : vector<1x128xf32> to vector<128xf32>
    %c4_21 = arith.constant 4 : index
    %c0_22 = arith.constant 0 : index
    %39 = vector.load %arg9[%c4_21, %c0_22] : memref<16x128xf32, #tpu.memory_space<vmem>>, vector<1x128xf32>
    %40 = vector.shape_cast %39 : vector<1x128xf32> to vector<128xf32>
    %41 = vector.shape_cast %38 : vector<128xf32> to vector<1x128xf32>
    tpu.vector_store %arg9[%c4_21, %c0_22], %41 {strides = array<i32>} : memref<16x128xf32, #tpu.memory_space<vmem>>, vector<1x128xf32>,
    %c5 = arith.constant 5 : index
    %42 = memref.load %arg0[%c5] : memref<16xi32, #tpu.memory_space<smem>>
    %43 = arith.index_cast %42 : i32 to index
    %c0_23 = arith.constant 0 : index
    %44 = vector.load %arg8[%43, %c0_23] : memref<10x128xf32, #tpu.memory_space<vmem>>, vector<1x128xf32>
    %45 = vector.shape_cast %44 : vector<1x128xf32> to vector<128xf32>
    %c5_24 = arith.constant 5 : index
    %c0_25 = arith.constant 0 : index
    %46 = vector.load %arg9[%c5_24, %c0_25] : memref<16x128xf32, #tpu.memory_space<vmem>>, vector<1x128xf32>
    %47 = vector.shape_cast %46 : vector<1x128xf32> to vector<128xf32>
    %48 = vector.shape_cast %45 : vector<128xf32> to vector<1x128xf32>
    tpu.vector_store %arg9[%c5_24, %c0_25], %48 {strides = array<i32>} : memref<16x128xf32, #tpu.memory_space<vmem>>, vector<1x128xf32>,
    %c6 = arith.constant 6 : index
    %49 = memref.load %arg0[%c6] : memref<16xi32, #tpu.memory_space<smem>>
    %50 = arith.index_cast %49 : i32 to index
    %c0_26 = arith.constant 0 : index
    %51 = vector.load %arg8[%50, %c0_26] : memref<10x128xf32, #tpu.memory_space<vmem>>, vector<1x128xf32>
    %52 = vector.shape_cast %51 : vector<1x128xf32> to vector<128xf32>
    %c6_27 = arith.constant 6 : index
    %c0_28 = arith.constant 0 : index
    %53 = vector.load %arg9[%c6_27, %c0_28] : memref<16x128xf32, #tpu.memory_space<vmem>>, vector<1x128xf32>
    %54 = vector.shape_cast %53 : vector<1x128xf32> to vector<128xf32>
    %55 = vector.shape_cast %52 : vector<128xf32> to vector<1x128xf32>
    tpu.vector_store %arg9[%c6_27, %c0_28], %55 {strides = array<i32>} : memref<16x128xf32, #tpu.memory_space<vmem>>, vector<1x128xf32>,
    %c7 = arith.constant 7 : index
    %56 = memref.load %arg0[%c7] : memref<16xi32, #tpu.memory_space<smem>>
    %57 = arith.index_cast %56 : i32 to index
    %c0_29 = arith.constant 0 : index
    %58 = vector.load %arg8[%57, %c0_29] : memref<10x128xf32, #tpu.memory_space<vmem>>, vector<1x128xf32>
    %59 = vector.shape_cast %58 : vector<1x128xf32> to vector<128xf32>
    %c7_30 = arith.constant 7 : index
    %c0_31 = arith.constant 0 : index
    %60 = vector.load %arg9[%c7_30, %c0_31] : memref<16x128xf32, #tpu.memory_space<vmem>>, vector<1x128xf32>
    %61 = vector.shape_cast %60 : vector<1x128xf32> to vector<128xf32>
    %62 = vector.shape_cast %59 : vector<128xf32> to vector<1x128xf32>
    tpu.vector_store %arg9[%c7_30, %c0_31], %62 {strides = array<i32>} : memref<16x128xf32, #tpu.memory_space<vmem>>, vector<1x128xf32>,
    %c8 = arith.constant 8 : index
    %63 = memref.load %arg0[%c8] : memref<16xi32, #tpu.memory_space<smem>>
    %64 = arith.index_cast %63 : i32 to index
    %c0_32 = arith.constant 0 : index
    %65 = vector.load %arg8[%64, %c0_32] : memref<10x128xf32, #tpu.memory_space<vmem>>, vector<1x128xf32>
    %66 = vector.shape_cast %65 : vector<1x128xf32> to vector<128xf32>
    %c8_33 = arith.constant 8 : index
    %c0_34 = arith.constant 0 : index
    %67 = vector.load %arg9[%c8_33, %c0_34] : memref<16x128xf32, #tpu.memory_space<vmem>>, vector<1x128xf32>
    %68 = vector.shape_cast %67 : vector<1x128xf32> to vector<128xf32>
    %69 = vector.shape_cast %66 : vector<128xf32> to vector<1x128xf32>
    tpu.vector_store %arg9[%c8_33, %c0_34], %69 {strides = array<i32>} : memref<16x128xf32, #tpu.memory_space<vmem>>, vector<1x128xf32>,
    %c9 = arith.constant 9 : index
    %70 = memref.load %arg0[%c9] : memref<16xi32, #tpu.memory_space<smem>>
    %71 = arith.index_cast %70 : i32 to index
    %c0_35 = arith.constant 0 : index
    %72 = vector.load %arg8[%71, %c0_35] : memref<10x128xf32, #tpu.memory_space<vmem>>, vector<1x128xf32>
    %73 = vector.shape_cast %72 : vector<1x128xf32> to vector<128xf32>
    %c9_36 = arith.constant 9 : index
    %c0_37 = arith.constant 0 : index
    %74 = vector.load %arg9[%c9_36, %c0_37] : memref<16x128xf32, #tpu.memory_space<vmem>>, vector<1x128xf32>
    %75 = vector.shape_cast %74 : vector<1x128xf32> to vector<128xf32>
    %76 = vector.shape_cast %73 : vector<128xf32> to vector<1x128xf32>
    tpu.vector_store %arg9[%c9_36, %c0_37], %76 {strides = array<i32>} : memref<16x128xf32, #tpu.memory_space<vmem>>, vector<1x128xf32>,
    %c10 = arith.constant 10 : index
    %77 = memref.load %arg0[%c10] : memref<16xi32, #tpu.memory_space<smem>>
    %78 = arith.index_cast %77 : i32 to index
    %c0_38 = arith.constant 0 : index
    %79 = vector.load %arg8[%78, %c0_38] : memref<10x128xf32, #tpu.memory_space<vmem>>, vector<1x128xf32>
    %80 = vector.shape_cast %79 : vector<1x128xf32> to vector<128xf32>
    %c10_39 = arith.constant 10 : index
    %c0_40 = arith.constant 0 : index
    %81 = vector.load %arg9[%c10_39, %c0_40] : memref<16x128xf32, #tpu.memory_space<vmem>>, vector<1x128xf32>
    %82 = vector.shape_cast %81 : vector<1x128xf32> to vector<128xf32>
    %83 = vector.shape_cast %80 : vector<128xf32> to vector<1x128xf32>
    tpu.vector_store %arg9[%c10_39, %c0_40], %83 {strides = array<i32>} : memref<16x128xf32, #tpu.memory_space<vmem>>, vector<1x128xf32>,
    %c11 = arith.constant 11 : index
    %84 = memref.load %arg0[%c11] : memref<16xi32, #tpu.memory_space<smem>>
    %85 = arith.index_cast %84 : i32 to index
    %c0_41 = arith.constant 0 : index
    %86 = vector.load %arg8[%85, %c0_41] : memref<10x128xf32, #tpu.memory_space<vmem>>, vector<1x128xf32>
    %87 = vector.shape_cast %86 : vector<1x128xf32> to vector<128xf32>
    %c11_42 = arith.constant 11 : index
    %c0_43 = arith.constant 0 : index
    %88 = vector.load %arg9[%c11_42, %c0_43] : memref<16x128xf32, #tpu.memory_space<vmem>>, vector<1x128xf32>
    %89 = vector.shape_cast %88 : vector<1x128xf32> to vector<128xf32>
    %90 = vector.shape_cast %87 : vector<128xf32> to vector<1x128xf32>
    tpu.vector_store %arg9[%c11_42, %c0_43], %90 {strides = array<i32>} : memref<16x128xf32, #tpu.memory_space<vmem>>, vector<1x128xf32>,
    %c12 = arith.constant 12 : index
    %91 = memref.load %arg0[%c12] : memref<16xi32, #tpu.memory_space<smem>>
    %92 = arith.index_cast %91 : i32 to index
    %c0_44 = arith.constant 0 : index
    %93 = vector.load %arg8[%92, %c0_44] : memref<10x128xf32, #tpu.memory_space<vmem>>, vector<1x128xf32>
    %94 = vector.shape_cast %93 : vector<1x128xf32> to vector<128xf32>
    %c12_45 = arith.constant 12 : index
    %c0_46 = arith.constant 0 : index
    %95 = vector.load %arg9[%c12_45, %c0_46] : memref<16x128xf32, #tpu.memory_space<vmem>>, vector<1x128xf32>
    %96 = vector.shape_cast %95 : vector<1x128xf32> to vector<128xf32>
    %97 = vector.shape_cast %94 : vector<128xf32> to vector<1x128xf32>
    tpu.vector_store %arg9[%c12_45, %c0_46], %97 {strides = array<i32>} : memref<16x128xf32, #tpu.memory_space<vmem>>, vector<1x128xf32>,
    %c13 = arith.constant 13 : index
    %98 = memref.load %arg0[%c13] : memref<16xi32, #tpu.memory_space<smem>>
    %99 = arith.index_cast %98 : i32 to index
    %c0_47 = arith.constant 0 : index
    %100 = vector.load %arg8[%99, %c0_47] : memref<10x128xf32, #tpu.memory_space<vmem>>, vector<1x128xf32>
    %101 = vector.shape_cast %100 : vector<1x128xf32> to vector<128xf32>
    %c13_48 = arith.constant 13 : index
    %c0_49 = arith.constant 0 : index
    %102 = vector.load %arg9[%c13_48, %c0_49] : memref<16x128xf32, #tpu.memory_space<vmem>>, vector<1x128xf32>
    %103 = vector.shape_cast %102 : vector<1x128xf32> to vector<128xf32>
    %104 = vector.shape_cast %101 : vector<128xf32> to vector<1x128xf32>
    tpu.vector_store %arg9[%c13_48, %c0_49], %104 {strides = array<i32>} : memref<16x128xf32, #tpu.memory_space<vmem>>, vector<1x128xf32>,
    %c14 = arith.constant 14 : index
    %105 = memref.load %arg0[%c14] : memref<16xi32, #tpu.memory_space<smem>>
    %106 = arith.index_cast %105 : i32 to index
    %c0_50 = arith.constant 0 : index
    %107 = vector.load %arg8[%106, %c0_50] : memref<10x128xf32, #tpu.memory_space<vmem>>, vector<1x128xf32>
    %108 = vector.shape_cast %107 : vector<1x128xf32> to vector<128xf32>
    %c14_51 = arith.constant 14 : index
    %c0_52 = arith.constant 0 : index
    %109 = vector.load %arg9[%c14_51, %c0_52] : memref<16x128xf32, #tpu.memory_space<vmem>>, vector<1x128xf32>
    %110 = vector.shape_cast %109 : vector<1x128xf32> to vector<128xf32>
    %111 = vector.shape_cast %108 : vector<128xf32> to vector<1x128xf32>
    tpu.vector_store %arg9[%c14_51, %c0_52], %111 {strides = array<i32>} : memref<16x128xf32, #tpu.memory_space<vmem>>, vector<1x128xf32>,
    %c15 = arith.constant 15 : index
    %112 = memref.load %arg0[%c15] : memref<16xi32, #tpu.memory_space<smem>>
    %113 = arith.index_cast %112 : i32 to index
    %c0_53 = arith.constant 0 : index
    %114 = vector.load %arg8[%113, %c0_53] : memref<10x128xf32, #tpu.memory_space<vmem>>, vector<1x128xf32>
    %115 = vector.shape_cast %114 : vector<1x128xf32> to vector<128xf32>
    %c15_54 = arith.constant 15 : index
    %c0_55 = arith.constant 0 : index
    %116 = vector.load %arg9[%c15_54, %c0_55] : memref<16x128xf32, #tpu.memory_space<vmem>>, vector<1x128xf32>
    %117 = vector.shape_cast %116 : vector<1x128xf32> to vector<128xf32>
    %118 = vector.shape_cast %115 : vector<128xf32> to vector<1x128xf32>
    tpu.vector_store %arg9[%c15_54, %c0_55], %118 {strides = array<i32>} : memref<16x128xf32, #tpu.memory_space<vmem>>, vector<1x128xf32>,
    %c0_56 = arith.constant 0 : index
    %c0_57 = arith.constant 0 : index
    %119 = vector.load %arg4[%c0_56, %c0_57] : memref<32x128xbf16, #tpu.memory_space<vmem>>, vector<32x128xbf16>
    %cst_58 = arith.constant 0.000000e+00 : f32
    %120 = vector.broadcast %cst_58 : f32 to vector<2x32xf32>
    %cst_59 = arith.constant 0.000000e+00 : f32
    %121 = vector.broadcast %cst_59 : f32 to vector<2x32xf32>
    %c0_i32 = arith.constant 0 : i32
    %c2_i32 = arith.constant 2 : i32
    %122 = arith.muli %c0_i32, %c2_i32 : i32
    %123 = arith.index_cast %122 : i32 to index
    %c0_60 = arith.constant 0 : index
    %124 = vector.load %arg9[%123, %c0_60] : memref<16x128xf32, #tpu.memory_space<vmem>>, vector<2x128xf32>
    %125 = arith.truncf %120 : vector<2x32xf32> to vector<2x32xbf16>
    %cst_61 = arith.constant dense<0.000000e+00> : vector<2x128xf32>
    %126 = tpu.matmul %125, %119, %cst_61 {dimension_numbers = #tpu.dot_dimension_numbers<[1], [0], [0], [1], [0, 0, 1, 1], [], []>} : vector<2x32xbf16>, vector<32x128xbf16>, vector<2x128xf32> -> vector<2x128xf32>
    %127 = arith.addf %124, %126 : vector<2x128xf32>
    %128 = arith.negf %127 : vector<2x128xf32>
    %129 = math.exp %128 : vector<2x128xf32>
    %cst_62 = arith.constant 1.000000e+00 : f32
    %130 = vector.broadcast %cst_62 : f32 to vector<2x128xf32>
    %131 = arith.addf %130, %129 : vector<2x128xf32>
    %132 = arith.divf %130, %131 : vector<2x128xf32>
    %133 = vector.extract_strided_slice %132 {offsets = [0, 0], sizes = [2, 32], strides = [1, 1]} : vector<2x128xf32> to vector<2x32xf32>
    %134 = vector.extract_strided_slice %132 {offsets = [0, 32], sizes = [2, 32], strides = [1, 1]} : vector<2x128xf32> to vector<2x32xf32>
    %135 = vector.extract_strided_slice %132 {offsets = [0, 64], sizes = [2, 32], strides = [1, 1]} : vector<2x128xf32> to vector<2x32xf32>
    %cst_63 = arith.constant 2.000000e+00 : f32
    %136 = vector.broadcast %cst_63 : f32 to vector<2x32xf32>
    %137 = arith.mulf %136, %135 : vector<2x32xf32>
    %cst_64 = arith.constant 1.000000e+00 : f32
    %138 = vector.broadcast %cst_64 : f32 to vector<2x32xf32>
    %139 = arith.subf %137, %138 : vector<2x32xf32>
    %140 = vector.extract_strided_slice %132 {offsets = [0, 96], sizes = [2, 32], strides = [1, 1]} : vector<2x128xf32> to vector<2x32xf32>
    %141 = arith.mulf %134, %121 : vector<2x32xf32>
    %142 = arith.mulf %133, %139 : vector<2x32xf32>
    %143 = arith.addf %141, %142 : vector<2x32xf32>
    %144 = math.tanh %143 : vector<2x32xf32>
    %145 = arith.mulf %140, %144 : vector<2x32xf32>
    %c1_i32 = arith.constant 1 : i32
    %c2_i32_65 = arith.constant 2 : i32
    %146 = arith.muli %c1_i32, %c2_i32_65 : i32
    %147 = arith.index_cast %146 : i32 to index
    %c0_66 = arith.constant 0 : index
    %148 = vector.load %arg9[%147, %c0_66] : memref<16x128xf32, #tpu.memory_space<vmem>>, vector<2x128xf32>
    %149 = arith.truncf %145 : vector<2x32xf32> to vector<2x32xbf16>
    %cst_67 = arith.constant dense<0.000000e+00> : vector<2x128xf32>
    %150 = tpu.matmul %149, %119, %cst_67 {dimension_numbers = #tpu.dot_dimension_numbers<[1], [0], [0], [1], [0, 0, 1, 1], [], []>} : vector<2x32xbf16>, vector<32x128xbf16>, vector<2x128xf32> -> vector<2x128xf32>
    %151 = arith.addf %148, %150 : vector<2x128xf32>
    %152 = arith.negf %151 : vector<2x128xf32>
    %153 = math.exp %152 : vector<2x128xf32>
    %cst_68 = arith.constant 1.000000e+00 : f32
    %154 = vector.broadcast %cst_68 : f32 to vector<2x128xf32>
    %155 = arith.addf %154, %153 : vector<2x128xf32>
    %156 = arith.divf %154, %155 : vector<2x128xf32>
    %157 = vector.extract_strided_slice %156 {offsets = [0, 0], sizes = [2, 32], strides = [1, 1]} : vector<2x128xf32> to vector<2x32xf32>
    %158 = vector.extract_strided_slice %156 {offsets = [0, 32], sizes = [2, 32], strides = [1, 1]} : vector<2x128xf32> to vector<2x32xf32>
    %159 = vector.extract_strided_slice %156 {offsets = [0, 64], sizes = [2, 32], strides = [1, 1]} : vector<2x128xf32> to vector<2x32xf32>
    %cst_69 = arith.constant 2.000000e+00 : f32
    %160 = vector.broadcast %cst_69 : f32 to vector<2x32xf32>
    %161 = arith.mulf %160, %159 : vector<2x32xf32>
    %cst_70 = arith.constant 1.000000e+00 : f32
    %162 = vector.broadcast %cst_70 : f32 to vector<2x32xf32>
    %163 = arith.subf %161, %162 : vector<2x32xf32>
    %164 = vector.extract_strided_slice %156 {offsets = [0, 96], sizes = [2, 32], strides = [1, 1]} : vector<2x128xf32> to vector<2x32xf32>
    %165 = arith.mulf %158, %143 : vector<2x32xf32>
    %166 = arith.mulf %157, %163 : vector<2x32xf32>
    %167 = arith.addf %165, %166 : vector<2x32xf32>
    %168 = math.tanh %167 : vector<2x32xf32>
    %169 = arith.mulf %164, %168 : vector<2x32xf32>
    %c2_i32_71 = arith.constant 2 : i32
    %c2_i32_72 = arith.constant 2 : i32
    %170 = arith.muli %c2_i32_71, %c2_i32_72 : i32
    %171 = arith.index_cast %170 : i32 to index
    %c0_73 = arith.constant 0 : index
    %172 = vector.load %arg9[%171, %c0_73] : memref<16x128xf32, #tpu.memory_space<vmem>>, vector<2x128xf32>
    %173 = arith.truncf %169 : vector<2x32xf32> to vector<2x32xbf16>
    %cst_74 = arith.constant dense<0.000000e+00> : vector<2x128xf32>
    %174 = tpu.matmul %173, %119, %cst_74 {dimension_numbers = #tpu.dot_dimension_numbers<[1], [0], [0], [1], [0, 0, 1, 1], [], []>} : vector<2x32xbf16>, vector<32x128xbf16>, vector<2x128xf32> -> vector<2x128xf32>
    %175 = arith.addf %172, %174 : vector<2x128xf32>
    %176 = arith.negf %175 : vector<2x128xf32>
    %177 = math.exp %176 : vector<2x128xf32>
    %cst_75 = arith.constant 1.000000e+00 : f32
    %178 = vector.broadcast %cst_75 : f32 to vector<2x128xf32>
    %179 = arith.addf %178, %177 : vector<2x128xf32>
    %180 = arith.divf %178, %179 : vector<2x128xf32>
    %181 = vector.extract_strided_slice %180 {offsets = [0, 0], sizes = [2, 32], strides = [1, 1]} : vector<2x128xf32> to vector<2x32xf32>
    %182 = vector.extract_strided_slice %180 {offsets = [0, 32], sizes = [2, 32], strides = [1, 1]} : vector<2x128xf32> to vector<2x32xf32>
    %183 = vector.extract_strided_slice %180 {offsets = [0, 64], sizes = [2, 32], strides = [1, 1]} : vector<2x128xf32> to vector<2x32xf32>
    %cst_76 = arith.constant 2.000000e+00 : f32
    %184 = vector.broadcast %cst_76 : f32 to vector<2x32xf32>
    %185 = arith.mulf %184, %183 : vector<2x32xf32>
    %cst_77 = arith.constant 1.000000e+00 : f32
    %186 = vector.broadcast %cst_77 : f32 to vector<2x32xf32>
    %187 = arith.subf %185, %186 : vector<2x32xf32>
    %188 = vector.extract_strided_slice %180 {offsets = [0, 96], sizes = [2, 32], strides = [1, 1]} : vector<2x128xf32> to vector<2x32xf32>
    %189 = arith.mulf %182, %167 : vector<2x32xf32>
    %190 = arith.mulf %181, %187 : vector<2x32xf32>
    %191 = arith.addf %189, %190 : vector<2x32xf32>
    %192 = math.tanh %191 : vector<2x32xf32>
    %193 = arith.mulf %188, %192 : vector<2x32xf32>
    %c3_i32 = arith.constant 3 : i32
    %c2_i32_78 = arith.constant 2 : i32
    %194 = arith.muli %c3_i32, %c2_i32_78 : i32
    %195 = arith.index_cast %194 : i32 to index
    %c0_79 = arith.constant 0 : index
    %196 = vector.load %arg9[%195, %c0_79] : memref<16x128xf32, #tpu.memory_space<vmem>>, vector<2x128xf32>
    %197 = arith.truncf %193 : vector<2x32xf32> to vector<2x32xbf16>
    %cst_80 = arith.constant dense<0.000000e+00> : vector<2x128xf32>
    %198 = tpu.matmul %197, %119, %cst_80 {dimension_numbers = #tpu.dot_dimension_numbers<[1], [0], [0], [1], [0, 0, 1, 1], [], []>} : vector<2x32xbf16>, vector<32x128xbf16>, vector<2x128xf32> -> vector<2x128xf32>
    %199 = arith.addf %196, %198 : vector<2x128xf32>
    %200 = arith.negf %199 : vector<2x128xf32>
    %201 = math.exp %200 : vector<2x128xf32>
    %cst_81 = arith.constant 1.000000e+00 : f32
    %202 = vector.broadcast %cst_81 : f32 to vector<2x128xf32>
    %203 = arith.addf %202, %201 : vector<2x128xf32>
    %204 = arith.divf %202, %203 : vector<2x128xf32>
    %205 = vector.extract_strided_slice %204 {offsets = [0, 0], sizes = [2, 32], strides = [1, 1]} : vector<2x128xf32> to vector<2x32xf32>
    %206 = vector.extract_strided_slice %204 {offsets = [0, 32], sizes = [2, 32], strides = [1, 1]} : vector<2x128xf32> to vector<2x32xf32>
    %207 = vector.extract_strided_slice %204 {offsets = [0, 64], sizes = [2, 32], strides = [1, 1]} : vector<2x128xf32> to vector<2x32xf32>
    %cst_82 = arith.constant 2.000000e+00 : f32
    %208 = vector.broadcast %cst_82 : f32 to vector<2x32xf32>
    %209 = arith.mulf %208, %207 : vector<2x32xf32>
    %cst_83 = arith.constant 1.000000e+00 : f32
    %210 = vector.broadcast %cst_83 : f32 to vector<2x32xf32>
    %211 = arith.subf %209, %210 : vector<2x32xf32>
    %212 = vector.extract_strided_slice %204 {offsets = [0, 96], sizes = [2, 32], strides = [1, 1]} : vector<2x128xf32> to vector<2x32xf32>
    %213 = arith.mulf %206, %191 : vector<2x32xf32>
    %214 = arith.mulf %205, %211 : vector<2x32xf32>
    %215 = arith.addf %213, %214 : vector<2x32xf32>
    %216 = math.tanh %215 : vector<2x32xf32>
    %217 = arith.mulf %212, %216 : vector<2x32xf32>
    %c4_i32 = arith.constant 4 : i32
    %c2_i32_84 = arith.constant 2 : i32
    %218 = arith.muli %c4_i32, %c2_i32_84 : i32
    %219 = arith.index_cast %218 : i32 to index
    %c0_85 = arith.constant 0 : index
    %220 = vector.load %arg9[%219, %c0_85] : memref<16x128xf32, #tpu.memory_space<vmem>>, vector<2x128xf32>
    %221 = arith.truncf %217 : vector<2x32xf32> to vector<2x32xbf16>
    %cst_86 = arith.constant dense<0.000000e+00> : vector<2x128xf32>
    %222 = tpu.matmul %221, %119, %cst_86 {dimension_numbers = #tpu.dot_dimension_numbers<[1], [0], [0], [1], [0, 0, 1, 1], [], []>} : vector<2x32xbf16>, vector<32x128xbf16>, vector<2x128xf32> -> vector<2x128xf32>
    %223 = arith.addf %220, %222 : vector<2x128xf32>
    %224 = arith.negf %223 : vector<2x128xf32>
    %225 = math.exp %224 : vector<2x128xf32>
    %cst_87 = arith.constant 1.000000e+00 : f32
    %226 = vector.broadcast %cst_87 : f32 to vector<2x128xf32>
    %227 = arith.addf %226, %225 : vector<2x128xf32>
    %228 = arith.divf %226, %227 : vector<2x128xf32>
    %229 = vector.extract_strided_slice %228 {offsets = [0, 0], sizes = [2, 32], strides = [1, 1]} : vector<2x128xf32> to vector<2x32xf32>
    %230 = vector.extract_strided_slice %228 {offsets = [0, 32], sizes = [2, 32], strides = [1, 1]} : vector<2x128xf32> to vector<2x32xf32>
    %231 = vector.extract_strided_slice %228 {offsets = [0, 64], sizes = [2, 32], strides = [1, 1]} : vector<2x128xf32> to vector<2x32xf32>
    %cst_88 = arith.constant 2.000000e+00 : f32
    %232 = vector.broadcast %cst_88 : f32 to vector<2x32xf32>
    %233 = arith.mulf %232, %231 : vector<2x32xf32>
    %cst_89 = arith.constant 1.000000e+00 : f32
    %234 = vector.broadcast %cst_89 : f32 to vector<2x32xf32>
    %235 = arith.subf %233, %234 : vector<2x32xf32>
    %236 = vector.extract_strided_slice %228 {offsets = [0, 96], sizes = [2, 32], strides = [1, 1]} : vector<2x128xf32> to vector<2x32xf32>
    %237 = arith.mulf %230, %215 : vector<2x32xf32>
    %238 = arith.mulf %229, %235 : vector<2x32xf32>
    %239 = arith.addf %237, %238 : vector<2x32xf32>
    %240 = math.tanh %239 : vector<2x32xf32>
    %241 = arith.mulf %236, %240 : vector<2x32xf32>
    %c5_i32 = arith.constant 5 : i32
    %c2_i32_90 = arith.constant 2 : i32
    %242 = arith.muli %c5_i32, %c2_i32_90 : i32
    %243 = arith.index_cast %242 : i32 to index
    %c0_91 = arith.constant 0 : index
    %244 = vector.load %arg9[%243, %c0_91] : memref<16x128xf32, #tpu.memory_space<vmem>>, vector<2x128xf32>
    %245 = arith.truncf %241 : vector<2x32xf32> to vector<2x32xbf16>
    %cst_92 = arith.constant dense<0.000000e+00> : vector<2x128xf32>
    %246 = tpu.matmul %245, %119, %cst_92 {dimension_numbers = #tpu.dot_dimension_numbers<[1], [0], [0], [1], [0, 0, 1, 1], [], []>} : vector<2x32xbf16>, vector<32x128xbf16>, vector<2x128xf32> -> vector<2x128xf32>
    %247 = arith.addf %244, %246 : vector<2x128xf32>
    %248 = arith.negf %247 : vector<2x128xf32>
    %249 = math.exp %248 : vector<2x128xf32>
    %cst_93 = arith.constant 1.000000e+00 : f32
    %250 = vector.broadcast %cst_93 : f32 to vector<2x128xf32>
    %251 = arith.addf %250, %249 : vector<2x128xf32>
    %252 = arith.divf %250, %251 : vector<2x128xf32>
    %253 = vector.extract_strided_slice %252 {offsets = [0, 0], sizes = [2, 32], strides = [1, 1]} : vector<2x128xf32> to vector<2x32xf32>
    %254 = vector.extract_strided_slice %252 {offsets = [0, 32], sizes = [2, 32], strides = [1, 1]} : vector<2x128xf32> to vector<2x32xf32>
    %255 = vector.extract_strided_slice %252 {offsets = [0, 64], sizes = [2, 32], strides = [1, 1]} : vector<2x128xf32> to vector<2x32xf32>
    %cst_94 = arith.constant 2.000000e+00 : f32
    %256 = vector.broadcast %cst_94 : f32 to vector<2x32xf32>
    %257 = arith.mulf %256, %255 : vector<2x32xf32>
    %cst_95 = arith.constant 1.000000e+00 : f32
    %258 = vector.broadcast %cst_95 : f32 to vector<2x32xf32>
    %259 = arith.subf %257, %258 : vector<2x32xf32>
    %260 = vector.extract_strided_slice %252 {offsets = [0, 96], sizes = [2, 32], strides = [1, 1]} : vector<2x128xf32> to vector<2x32xf32>
    %261 = arith.mulf %254, %239 : vector<2x32xf32>
    %262 = arith.mulf %253, %259 : vector<2x32xf32>
    %263 = arith.addf %261, %262 : vector<2x32xf32>
    %264 = math.tanh %263 : vector<2x32xf32>
    %265 = arith.mulf %260, %264 : vector<2x32xf32>
    %c6_i32 = arith.constant 6 : i32
    %c2_i32_96 = arith.constant 2 : i32
    %266 = arith.muli %c6_i32, %c2_i32_96 : i32
    %267 = arith.index_cast %266 : i32 to index
    %c0_97 = arith.constant 0 : index
    %268 = vector.load %arg9[%267, %c0_97] : memref<16x128xf32, #tpu.memory_space<vmem>>, vector<2x128xf32>
    %269 = arith.truncf %265 : vector<2x32xf32> to vector<2x32xbf16>
    %cst_98 = arith.constant dense<0.000000e+00> : vector<2x128xf32>
    %270 = tpu.matmul %269, %119, %cst_98 {dimension_numbers = #tpu.dot_dimension_numbers<[1], [0], [0], [1], [0, 0, 1, 1], [], []>} : vector<2x32xbf16>, vector<32x128xbf16>, vector<2x128xf32> -> vector<2x128xf32>
    %271 = arith.addf %268, %270 : vector<2x128xf32>
    %272 = arith.negf %271 : vector<2x128xf32>
    %273 = math.exp %272 : vector<2x128xf32>
    %cst_99 = arith.constant 1.000000e+00 : f32
    %274 = vector.broadcast %cst_99 : f32 to vector<2x128xf32>
    %275 = arith.addf %274, %273 : vector<2x128xf32>
    %276 = arith.divf %274, %275 : vector<2x128xf32>
    %277 = vector.extract_strided_slice %276 {offsets = [0, 0], sizes = [2, 32], strides = [1, 1]} : vector<2x128xf32> to vector<2x32xf32>
    %278 = vector.extract_strided_slice %276 {offsets = [0, 32], sizes = [2, 32], strides = [1, 1]} : vector<2x128xf32> to vector<2x32xf32>
    %279 = vector.extract_strided_slice %276 {offsets = [0, 64], sizes = [2, 32], strides = [1, 1]} : vector<2x128xf32> to vector<2x32xf32>
    %cst_100 = arith.constant 2.000000e+00 : f32
    %280 = vector.broadcast %cst_100 : f32 to vector<2x32xf32>
    %281 = arith.mulf %280, %279 : vector<2x32xf32>
    %cst_101 = arith.constant 1.000000e+00 : f32
    %282 = vector.broadcast %cst_101 : f32 to vector<2x32xf32>
    %283 = arith.subf %281, %282 : vector<2x32xf32>
    %284 = vector.extract_strided_slice %276 {offsets = [0, 96], sizes = [2, 32], strides = [1, 1]} : vector<2x128xf32> to vector<2x32xf32>
    %285 = arith.mulf %278, %263 : vector<2x32xf32>
    %286 = arith.mulf %277, %283 : vector<2x32xf32>
    %287 = arith.addf %285, %286 : vector<2x32xf32>
    %288 = math.tanh %287 : vector<2x32xf32>
    %289 = arith.mulf %284, %288 : vector<2x32xf32>
    %c7_i32 = arith.constant 7 : i32
    %c2_i32_102 = arith.constant 2 : i32
    %290 = arith.muli %c7_i32, %c2_i32_102 : i32
    %291 = arith.index_cast %290 : i32 to index
    %c0_103 = arith.constant 0 : index
    %292 = vector.load %arg9[%291, %c0_103] : memref<16x128xf32, #tpu.memory_space<vmem>>, vector<2x128xf32>
    %293 = arith.truncf %289 : vector<2x32xf32> to vector<2x32xbf16>
    %cst_104 = arith.constant dense<0.000000e+00> : vector<2x128xf32>
    %294 = tpu.matmul %293, %119, %cst_104 {dimension_numbers = #tpu.dot_dimension_numbers<[1], [0], [0], [1], [0, 0, 1, 1], [], []>} : vector<2x32xbf16>, vector<32x128xbf16>, vector<2x128xf32> -> vector<2x128xf32>
    %295 = arith.addf %292, %294 : vector<2x128xf32>
    %296 = arith.negf %295 : vector<2x128xf32>
    %297 = math.exp %296 : vector<2x128xf32>
    %cst_105 = arith.constant 1.000000e+00 : f32
    %298 = vector.broadcast %cst_105 : f32 to vector<2x128xf32>
    %299 = arith.addf %298, %297 : vector<2x128xf32>
    %300 = arith.divf %298, %299 : vector<2x128xf32>
    %301 = vector.extract_strided_slice %300 {offsets = [0, 0], sizes = [2, 32], strides = [1, 1]} : vector<2x128xf32> to vector<2x32xf32>
    %302 = vector.extract_strided_slice %300 {offsets = [0, 32], sizes = [2, 32], strides = [1, 1]} : vector<2x128xf32> to vector<2x32xf32>
    %303 = vector.extract_strided_slice %300 {offsets = [0, 64], sizes = [2, 32], strides = [1, 1]} : vector<2x128xf32> to vector<2x32xf32>
    %cst_106 = arith.constant 2.000000e+00 : f32
    %304 = vector.broadcast %cst_106 : f32 to vector<2x32xf32>
    %305 = arith.mulf %304, %303 : vector<2x32xf32>
    %cst_107 = arith.constant 1.000000e+00 : f32
    %306 = vector.broadcast %cst_107 : f32 to vector<2x32xf32>
    %307 = arith.subf %305, %306 : vector<2x32xf32>
    %308 = vector.extract_strided_slice %300 {offsets = [0, 96], sizes = [2, 32], strides = [1, 1]} : vector<2x128xf32> to vector<2x32xf32>
    %309 = arith.mulf %302, %287 : vector<2x32xf32>
    %310 = arith.mulf %301, %307 : vector<2x32xf32>
    %311 = arith.addf %309, %310 : vector<2x32xf32>
    %312 = math.tanh %311 : vector<2x32xf32>
    %313 = arith.mulf %308, %312 : vector<2x32xf32>
    %c8_i32 = arith.constant 8 : i32
    %c0_108 = arith.constant 0 : index
    %c0_109 = arith.constant 0 : index
    %314 = vector.load %arg5[%c0_108, %c0_109] : memref<1x32xf32, #tpu.memory_space<vmem>>, vector<1x32xf32>
    %315 = vector.broadcast %314 : vector<1x32xf32> to vector<2x32xf32>
    %316 = arith.mulf %313, %315 : vector<2x32xf32>
    %cst_110 = arith.constant dense<0.000000e+00> : vector<2xf32>
    %317 = vector.multi_reduction <add>, %316, %cst_110 [1] : vector<2x32xf32> to vector<2xf32>
    %318 = vector.shape_cast %317 : vector<2xf32> to vector<2x1xf32>
    %c0_111 = arith.constant 0 : index
    %319 = memref.load %arg6[%c0_111] : memref<1xf32, #tpu.memory_space<smem>>
    %320 = vector.broadcast %319 : f32 to vector<2x1xf32>
    %321 = arith.addf %318, %320 : vector<2x1xf32>
    %322 = arith.negf %321 : vector<2x1xf32>
    %323 = math.exp %322 : vector<2x1xf32>
    %cst_112 = arith.constant 1.000000e+00 : f32
    %324 = vector.broadcast %cst_112 : f32 to vector<2x1xf32>
    %325 = arith.addf %324, %323 : vector<2x1xf32>
    %326 = arith.divf %324, %325 : vector<2x1xf32>
    %c0_113 = arith.constant 0 : index
    %c0_114 = arith.constant 0 : index
    %327 = vector.load %arg7[%c0_113, %c0_114] : memref<2x1xf32, #tpu.memory_space<vmem>>, vector<2x1xf32>
    tpu.vector_store %arg7[%c0_113, %c0_114], %326 {strides = array<i32>} : memref<2x1xf32, #tpu.memory_space<vmem>>, vector<2x1xf32>,
    return
  }
}

</mosaic_0001>

<llo_original>
// kernel: tpu_custom_call.1
$region0: #{tpu_custom_call.1}
  #allocation0 [shape = 'u32[]', space=smem, size = 0x4, offset = 0x4, fixed_abs, tag = 'smem constant byte address 0x4 - core index']
  #allocation1 [shape = 'u32[144,128]{1,0:T(1,128)}', space=vmem, size = 0x12000, scoped, tag = 'internal scratch']
  #allocation2 [shape = 'f32[10,128]{1,0:T(8,128)}', space=vmem, size = 0x2000, scoped, tag = 'scratch operand']
  #allocation3 [shape = 'f32[16,128]{1,0:T(8,128)}', space=vmem, size = 0x2000, scoped, tag = 'scratch operand']
  #allocation4 [shape = 'f32[1]{0:T(128)S(6)}', space=smem, size = 0x200, scoped, tag = 'scoped memory for tpu_custom_call.1']
  %s0 = inlined_call_operand.vmem [shape: s32[16], index: 0, kind: input, shape index: {}]
  %s1 = inlined_call_operand.hbm [shape: f32[10,32], index: 1, kind: input, shape index: {}]
  %s2 = inlined_call_operand.hbm [shape: f32[32,128], index: 2, kind: input, shape index: {}]
  %s3 = inlined_call_operand.vmem [shape: f32[1,128], index: 3, kind: input, shape index: {}]
  %s4 = inlined_call_operand.hbm [shape: bf16[32,128], index: 4, kind: input, shape index: {}]
  %s5 = inlined_call_operand.vmem [shape: f32[1,32], index: 5, kind: input, shape index: {}]
  %s6 = inlined_call_operand.<no memory space> [shape: f32[1], index: 6, kind: input, shape index: {}]
  %s7 = inlined_call_operand.vmem [shape: f32[2,1], index: 7, kind: output, shape index: {}]
  %s8 = sld [smem:[#allocation0]]
  $region54: #{tpu_custom_call.1} parent=0
    _
  %s10 = ssub.s32 1, %s8
  %s11 = scalar_select 0, %s10, %s8
  %12 = sst [smem:[#allocation4]] %s6
  $region1: #{tpu_custom_call.1} parent=0
    #allocation5 [shape = 'u8[512]{0}', space=smem, size = 0x200, scoped, tag = 'input window, operand 0, single buffered']
    #allocation6 [shape = 's32[1]{0}', space=sflag, size = 0x4, scoped, tag = 'scoped memory for tpu_custom_call.1']
    #allocation7 [shape = 's32[1]{0}', space=sflag, size = 0x4, scoped, tag = 'scoped memory for tpu_custom_call.1']
    #allocation8 [shape = 'u8[8192]{0}', space=vmem, size = 0x2000, scoped, tag = 'input window, operand 1, single buffered']
    #allocation9 [shape = 'u8[16384]{0}', space=vmem, size = 0x4000, scoped, tag = 'input window, operand 2, single buffered']
    #allocation10 [shape = 's32[1]{0}', space=sflag, size = 0x4, scoped, tag = 'scoped memory for tpu_custom_call.1']
    #allocation11 [shape = 'u8[8192]{0}', space=vmem, size = 0x2000, scoped, tag = 'input window, operand 4, single buffered']
    %13 = vsyncpa [#allocation7], 0
    %14 = vsyncpa [#allocation6], 0
    %15 = vsyncpa [#allocation10], 0
    // Predicated region
    $region2: #{tpu_custom_call.1} parent=1 // pred_check
      _
    $region3: #{tpu_custom_call.1} parent=1 // pred_check_branch
      %17 = sbr.rel (0) target = $region5
    $region4: #{tpu_custom_call.1} parent=1 // pred_region
      %s19 = ssub.s32 16, 16
      %20 = vsyncadd [#allocation7], %s19
      %s22 = sshll.u32 %s0, 4
      %s23 = int_to_ptr.vmem [resolvable:$true] %s22
      %25 = dma.vmem_to_smem %s23, 16, [#allocation5], [#allocation7]
    $region5: #{tpu_custom_call.1} parent=1 // pred_fallthru
      _
    // Predicated region
    $region6: #{tpu_custom_call.1} parent=1 // pred_check
      _
    $region7: #{tpu_custom_call.1} parent=1 // pred_check_branch
      %27 = sbr.rel (0) target = $region9
    $region8: #{tpu_custom_call.1} parent=1 // pred_region
      %s29 = ssub.s32 256, 256
      %30 = vsyncadd [#allocation6], %s29
      %s31 = sshll.u32 [#allocation8], 4
      %s32 = int_to_ptr.vmem [resolvable:$true] %s31
      %37 = dma.hbm_to_vmem [thread:$0]  %s1, 256, %s32, [#allocation6], 128, 128, 8
    $region9: #{tpu_custom_call.1} parent=1 // pred_fallthru
      _
    // Predicated region
    $region10: #{tpu_custom_call.1} parent=1 // pred_check
      _
    $region11: #{tpu_custom_call.1} parent=1 // pred_check_branch
      %39 = sbr.rel (0) target = $region13
    $region12: #{tpu_custom_call.1} parent=1 // pred_region
      %s41 = ssub.s32 512, 512
      %42 = vsyncadd [#allocation10], %s41
      %s43 = sshll.u32 [#allocation9], 4
      %s44 = int_to_ptr.vmem [resolvable:$true] %s43
      %49 = dma.hbm_to_vmem [thread:$0]  %s2, 512, %s44, [#allocation10], 128, 128, 8
    $region13: #{tpu_custom_call.1} parent=1 // pred_fallthru
      _
    // Predicated region
    $region14: #{tpu_custom_call.1} parent=1 // pred_check
      _
    $region15: #{tpu_custom_call.1} parent=1 // pred_check_branch
      %51 = sbr.rel (0) target = $region17
    $region16: #{tpu_custom_call.1} parent=1 // pred_region
      _
    $region17: #{tpu_custom_call.1} parent=1 // pred_fallthru
      _
    // Predicated region
    $region18: #{tpu_custom_call.1} parent=1 // pred_check
      _
    $region19: #{tpu_custom_call.1} parent=1 // pred_check_branch
      %53 = sbr.rel (0) target = $region21
    $region20: #{tpu_custom_call.1} parent=1 // pred_region
      %s55 = ssub.s32 256, 256
      %56 = vsyncadd [#allocation10], %s55
      %s57 = sshll.u32 [#allocation11], 4
      %s58 = int_to_ptr.vmem [resolvable:$true] %s57
      %63 = dma.hbm_to_vmem [thread:$0]  %s4, 256, %s58, [#allocation10], 64, 64, 4
    $region21: #{tpu_custom_call.1} parent=1 // pred_fallthru
      _
    // Predicated region
    $region22: #{tpu_custom_call.1} parent=1 // pred_check
      _
    $region23: #{tpu_custom_call.1} parent=1 // pred_check_branch
      %65 = sbr.rel (0) target = $region25
    $region24: #{tpu_custom_call.1} parent=1 // pred_region
      _
    $region25: #{tpu_custom_call.1} parent=1 // pred_fallthru
      _
    // Predicated region
    $region26: #{tpu_custom_call.1} parent=1 // pred_check
      _
    $region27: #{tpu_custom_call.1} parent=1 // pred_check_branch
      %67 = sbr.rel (0) target = $region29
    $region28: #{tpu_custom_call.1} parent=1 // pred_region
      _
    $region29: #{tpu_custom_call.1} parent=1 // pred_fallthru
      _
    // Predicated region
    $region30: #{tpu_custom_call.1} parent=1 // pred_check
      _
    $region31: #{tpu_custom_call.1} parent=1 // pred_check_branch
      %69 = sbr.rel (0) target = $region33
    $region32: #{tpu_custom_call.1} parent=1 // pred_region
      %70 = dma.done [#allocation7], 16
    $region33: #{tpu_custom_call.1} parent=1 // pred_fallthru
      _
    // Predicated region
    $region34: #{tpu_custom_call.1} parent=1 // pred_check
      _
    $region35: #{tpu_custom_call.1} parent=1 // pred_check_branch
      %72 = sbr.rel (0) target = $region37
    $region36: #{tpu_custom_call.1} parent=1 // pred_region
      %73 = dma.done [#allocation6], 256
    $region37: #{tpu_custom_call.1} parent=1 // pred_fallthru
      _
    // Predicated region
    $region38: #{tpu_custom_call.1} parent=1 // pred_check
      _
    $region39: #{tpu_custom_call.1} parent=1 // pred_check_branch
      %75 = sbr.rel (0) target = $region41
    $region40: #{tpu_custom_call.1} parent=1 // pred_region
      %76 = dma.done [#allocation10], 512
    $region41: #{tpu_custom_call.1} parent=1 // pred_fallthru
      _
    // Predicated region
    $region42: #{tpu_custom_call.1} parent=1 // pred_check
      _
    $region43: #{tpu_custom_call.1} parent=1 // pred_check_branch
      %78 = sbr.rel (0) target = $region45
    $region44: #{tpu_custom_call.1} parent=1 // pred_region
      %79 = dma.done [#allocation10], 256
    $region45: #{tpu_custom_call.1} parent=1 // pred_fallthru
      _
    %80 = sfence
    %v82 = vld [vmem:[#allocation8] sm:$0xff]
    %v83 = vld [vmem:[#allocation8 + $0x8] sm:$0x3]
    %v84 = vld [vmem:[#allocation9] sm:$0xff]
    %v85 = vld [vmem:[#allocation9 + $0x8] sm:$0xff]
    %v86 = vld [vmem:[#allocation9 + $0x10] sm:$0xff]
    %v87 = vld [vmem:[#allocation9 + $0x18] sm:$0xff]
    %v88 = vld [vmem:[%s3] sm:$0x1]
    %v90 = vlaneseq
    %v91 = vshrl.u32 %v90, 7
    %v92 = vsub.s32 0, %v91
    %v93 = vrot.slane %v88, %v92
    %vm95 = vcmask 261120
    %v97 = vsel %vm95, %v82, 0
    %v100 = vsel %vm95, %v83, 0
    %102 = vmatprep.subr.mxu0 0.0
    %103 = vmatpush1.msra.mxu0 0.0
    %104 = vmatprep.subr.mxu0 0.0
    %105 = vmatpush1.msra.mxu0 0.0
    %106 = vmatprep.subr.mxu0 0.0
    %107 = vmatpush1.msra.mxu0 0.0
    %108 = vmatprep.subr.mxu0 0.0
    %109 = vmatpush1.msra.mxu0 0.0
    %110 = vmatprep.subr.mxu0 0.0
    %111 = vmatpush1.msra.mxu0 0.0
    %112 = vmatprep.subr.mxu0 0.0
    %113 = vmatpush1.msra.mxu0 0.0
    %114 = vmatprep.subr.mxu0 0.0
    %115 = vmatpush1.msra.mxu0 0.0
    %116 = vmatprep.subr.mxu0 0.0
    %117 = vmatpush1.msra.mxu0 0.0
    %118 = vmatprep.subr.mxu0 0.0
    %119 = vmatpush1.msra.mxu0 0.0
    %120 = vmatprep.subr.mxu0 0.0
    %121 = vmatpush1.msra.mxu0 0.0
    %122 = vmatprep.subr.mxu0 0.0
    %123 = vmatpush1.msra.mxu0 0.0
    %124 = vmatprep.subr.mxu0 0.0
    %125 = vmatpush1.msra.mxu0 0.0
    %126 = vmatprep.subr.mxu0 0.0
    %127 = vmatpush1.msra.mxu0 %v87
    %128 = vmatprep.subr.mxu0 0.0
    %129 = vmatpush1.msra.mxu0 %v86
    %130 = vmatprep.subr.mxu0 0.0
    %131 = vmatpush1.msra.mxu0 %v85
    %132 = vmatprep.subr.mxu0 0.0
    %133 = vmatpush1.msra.mxu0 %v84
    %134 = vmatprep.subr.mxu0 0.0
    %135 = vmatpush2.msra.mxu0 0.0
    %136 = vmatprep.subr.mxu0 0.0
    %137 = vmatpush2.msra.mxu0 0.0
    %138 = vmatprep.subr.mxu0 0.0
    %139 = vmatpush2.msra.mxu0 0.0
    %140 = vmatprep.subr.mxu0 0.0
    %141 = vmatpush2.msra.mxu0 0.0
    %142 = vmatprep.subr.mxu0 0.0
    %143 = vmatpush2.msra.mxu0 0.0
    %144 = vmatprep.subr.mxu0 0.0
    %145 = vmatpush2.msra.mxu0 0.0
    %146 = vmatprep.subr.mxu0 0.0
    %147 = vmatpush2.msra.mxu0 0.0
    %148 = vmatprep.subr.mxu0 0.0
    %149 = vmatpush2.msra.mxu0 0.0
    %150 = vmatprep.subr.mxu0 0.0
    %151 = vmatpush2.msra.mxu0 0.0
    %152 = vmatprep.subr.mxu0 0.0
    %153 = vmatpush2.msra.mxu0 0.0
    %154 = vmatprep.subr.mxu0 0.0
    %155 = vmatpush2.msra.mxu0 0.0
    %156 = vmatprep.subr.mxu0 0.0
    %157 = vmatpush2.msra.mxu0 0.0
    %158 = vmatprep.subr.mxu0 0.0
    %159 = vmatpush2.msra.mxu0 0.0
    %160 = vmatprep.subr.mxu0 0.0
    %161 = vmatpush2.msra.mxu0 0.0
    %162 = vmatprep.subr.mxu0 0.0
    %163 = vmatpush2.msra.mxu0 0.0
    %164 = vmatprep.subr.mxu0 0.0
    %165 = vmatpush2.msra.mxu0 0.0
    %166 = vmatprep.mubr.f32.mxu0 0.0
    %167 = vmatmul.mubr.f32.gmra.mxu0 %v97
    %v168 = vpop.f32.mrf.mxu0
    %v169 = vadd.f32 %v93, %v168
    %v170 = vpop.f32.mrf.mxu0
    %171 = vmatprep.mubr.f32.mxu0 0.0
    %172 = vmatmul.mubr.f32.gmra.mxu0 %v100
    %v173 = vpop.f32.mrf.mxu0
    %v174 = vadd.f32 %v93, %v173
    %v175 = vpop.f32.mrf.mxu0
    %176 = vdwg.mxu0
    %177 = vst [vmem:[#allocation2] sm:$0xff] %v169
    %178 = vst [vmem:[#allocation2 + $0x8] sm:$0x3] %v174
    %s179 = sld [smem:[#allocation5]]
    %s180 = scalar_lea.vmem [#allocation2], %s179
    %v181 = vld [vmem:[%s180] sm:$0x1]
    %182 = vst [vmem:[#allocation3] sm:$0x1] %v181
    %s183 = sld [smem:[#allocation5 + $0x1]]
    %s184 = scalar_lea.vmem [#allocation2], %s183
    %v185 = vld [vmem:[%s184] sm:$0x1]
    %186 = vst [vmem:[#allocation3 + $0x1] sm:$0x1] %v185
    %s187 = sld [smem:[#allocation5 + $0x2]]
    %s188 = scalar_lea.vmem [#allocation2], %s187
    %v189 = vld [vmem:[%s188] sm:$0x1]
    %190 = vst [vmem:[#allocation3 + $0x2] sm:$0x1] %v189
    %s191 = sld [smem:[#allocation5 + $0x3]]
    %s192 = scalar_lea.vmem [#allocation2], %s191
    %v193 = vld [vmem:[%s192] sm:$0x1]
    %194 = vst [vmem:[#allocation3 + $0x3] sm:$0x1] %v193
    %s195 = sld [smem:[#allocation5 + $0x4]]
    %s196 = scalar_lea.vmem [#allocation2], %s195
    %v197 = vld [vmem:[%s196] sm:$0x1]
    %198 = vst [vmem:[#allocation3 + $0x4] sm:$0x1] %v197
    %s199 = sld [smem:[#allocation5 + $0x5]]
    %s200 = scalar_lea.vmem [#allocation2], %s199
    %v201 = vld [vmem:[%s200] sm:$0x1]
    %202 = vst [vmem:[#allocation3 + $0x5] sm:$0x1] %v201
    %s203 = sld [smem:[#allocation5 + $0x6]]
    %s204 = scalar_lea.vmem [#allocation2], %s203
    %v205 = vld [vmem:[%s204] sm:$0x1]
    %206 = vst [vmem:[#allocation3 + $0x6] sm:$0x1] %v205
    %s207 = sld [smem:[#allocation5 + $0x7]]
    %s208 = scalar_lea.vmem [#allocation2], %s207
    %v209 = vld [vmem:[%s208] sm:$0x1]
    %210 = vst [vmem:[#allocation3 + $0x7] sm:$0x1] %v209
    %s211 = sld [smem:[#allocation5 + $0x8]]
    %s212 = scalar_lea.vmem [#allocation2], %s211
    %v213 = vld [vmem:[%s212] sm:$0x1]
    %214 = vst [vmem:[#allocation3 + $0x8] sm:$0x1] %v213
    %s215 = sld [smem:[#allocation5 + $0x9]]
    %s216 = scalar_lea.vmem [#allocation2], %s215
    %v217 = vld [vmem:[%s216] sm:$0x1]
    %218 = vst [vmem:[#allocation3 + $0x9] sm:$0x1] %v217
    %s219 = sld [smem:[#allocation5 + $0xa]]
    %s220 = scalar_lea.vmem [#allocation2], %s219
    %v221 = vld [vmem:[%s220] sm:$0x1]
    %222 = vst [vmem:[#allocation3 + $0xa] sm:$0x1] %v221
    %s223 = sld [smem:[#allocation5 + $0xb]]
    %s224 = scalar_lea.vmem [#allocation2], %s223
    %v225 = vld [vmem:[%s224] sm:$0x1]
    %226 = vst [vmem:[#allocation3 + $0xb] sm:$0x1] %v225
    %s227 = sld [smem:[#allocation5 + $0xc]]
    %s228 = scalar_lea.vmem [#allocation2], %s227
    %v229 = vld [vmem:[%s228] sm:$0x1]
    %230 = vst [vmem:[#allocation3 + $0xc] sm:$0x1] %v229
    %s231 = sld [smem:[#allocation5 + $0xd]]
    %s232 = scalar_lea.vmem [#allocation2], %s231
    %v233 = vld [vmem:[%s232] sm:$0x1]
    %234 = vst [vmem:[#allocation3 + $0xd] sm:$0x1] %v233
    %s235 = sld [smem:[#allocation5 + $0xe]]
    %s236 = scalar_lea.vmem [#allocation2], %s235
    %v237 = vld [vmem:[%s236] sm:$0x1]
    %238 = vst [vmem:[#allocation3 + $0xe] sm:$0x1] %v237
    %s239 = sld [smem:[#allocation5 + $0xf]]
    %s240 = scalar_lea.vmem [#allocation2], %s239
    %v241 = vld [vmem:[%s240] sm:$0x1]
    %242 = vst [vmem:[#allocation3 + $0xf] sm:$0x1] %v241
    %v243 = vld [vmem:[#allocation11] sm:$0xf]
    %v244 = vld [vmem:[#allocation11 + $0x4] sm:$0xf]
    %v245 = vld [vmem:[#allocation11 + $0x8] sm:$0xf]
    %v246 = vld [vmem:[#allocation11 + $0xc] sm:$0xf]
    %v247 = vld [vmem:[#allocation3] sm:$0x3]
    %v252 = vunpack.c.l.b16 %v243
    %v253 = vunpack.c.l.b16 %v244
    %v254 = vunpack.c.l.b16 %v245
    %v255 = vunpack.c.l.b16 %v246
    %v256 = vpack.c.b16 %v253, %v252
    %v257 = vpack.c.b16 %v255, %v254
    %v261 = vsel %vm95, 0, 0
    %263 = vmatprep.subr.bf16.mxu0 0
    %264 = vmatpush1.bf16.msra.mxu0 0
    %265 = vmatprep.subr.bf16.mxu0 0
    %266 = vmatpush1.bf16.msra.mxu0 0
    %267 = vmatprep.subr.bf16.mxu0 0
    %268 = vmatpush1.bf16.msra.mxu0 0
    %269 = vmatprep.subr.bf16.mxu0 0
    %270 = vmatpush1.bf16.msra.mxu0 0
    %271 = vmatprep.subr.bf16.mxu0 0
    %272 = vmatpush1.bf16.msra.mxu0 0
    %273 = vmatprep.subr.bf16.mxu0 0
    %274 = vmatpush1.bf16.msra.mxu0 0
    %275 = vmatprep.subr.bf16.mxu0 0
    %276 = vmatpush1.bf16.msra.mxu0 %v257
    %277 = vmatprep.subr.bf16.mxu0 0
    %278 = vmatpush1.bf16.msra.mxu0 %v256
    %279 = vmatprep.subr.bf16.mxu0 0
    %280 = vmatpush2.bf16.msra.mxu0 0
    %281 = vmatprep.subr.bf16.mxu0 0
    %282 = vmatpush2.bf16.msra.mxu0 0
    %283 = vmatprep.subr.bf16.mxu0 0
    %284 = vmatpush2.bf16.msra.mxu0 0
    %285 = vmatprep.subr.bf16.mxu0 0
    %286 = vmatpush2.bf16.msra.mxu0 0
    %287 = vmatprep.subr.bf16.mxu0 0
    %288 = vmatpush2.bf16.msra.mxu0 0
    %289 = vmatprep.subr.bf16.mxu0 0
    %290 = vmatpush2.bf16.msra.mxu0 0
    %291 = vmatprep.subr.bf16.mxu0 0
    %292 = vmatpush2.bf16.msra.mxu0 0
    %293 = vmatprep.subr.bf16.mxu0 0
    %294 = vmatpush2.bf16.msra.mxu0 0
    %295 = vmatprep.mubr.bf16.mxu0 0
    %296 = vmatmul.mubr.bf16.gmra.mxu0 %v261
    %v297 = vpop.f32.mrf.mxu0
    %v298 = vadd.f32 0.0, %v297
    %v299 = vpop.f32.mrf.mxu0
    %v300 = vpop.f32.mrf.mxu0
    %v301 = vpop.f32.mrf.mxu0
    %302 = vdwg.mxu0
    %v303 = vadd.f32 %v247, %v298
    %v304 = vxor.u32 %v303, 2147483648
    %v305 = vmul.f32 %v304, 1.442695
    %v306 = vpow.pop %v305
    %v307 = vadd.f32 %v306, 1.0
    %v308 = vrcp.pop %v307
    %v309 = vmul.f32 1.0, %v308
    %v310 = vmul.f32 %v309, 2.0
    %v311 = vsub.f32 %v310, 1.0
    %v312 = vmul.f32 %v309, 0.0
    %314 = vrot.lane.b32.xlu0 %v311, 64
    %v315 = vpop.permute.xlu0 %314
    %v317 = vmul.f32 %v309, %v315
    %319 = vrot.lane.b32.xlu0 %v317, 32
    %v320 = vpop.permute.xlu0 %319
    %v322 = vadd.f32 %v312, %v320
    %v323 = vtanh.pop %v322
    %325 = vrot.lane.b32.xlu0 %v323, 64
    %v326 = vpop.permute.xlu0 %325
    %v328 = vmul.f32 %v309, %v326
    %v329 = vld [vmem:[#allocation3 + $0x2] sm:$0x3]
    %v330 = vpack.c.bf16 %v328, %v328
    %332 = vrot.lane.b32.xlu0 %v330, 32
    %v333 = vpop.permute.xlu0 %332
    %v335 = vsel %vm95, %v333, 0
    %337 = vmatprep.subr.bf16.mxu0 0
    %338 = vmatpush1.bf16.msra.mxu0 0
    %339 = vmatprep.subr.bf16.mxu0 0
    %340 = vmatpush1.bf16.msra.mxu0 0
    %341 = vmatprep.subr.bf16.mxu0 0
    %342 = vmatpush1.bf16.msra.mxu0 0
    %343 = vmatprep.subr.bf16.mxu0 0
    %344 = vmatpush1.bf16.msra.mxu0 0
    %345 = vmatprep.subr.bf16.mxu0 0
    %346 = vmatpush1.bf16.msra.mxu0 0
    %347 = vmatprep.subr.bf16.mxu0 0
    %348 = vmatpush1.bf16.msra.mxu0 0
    %349 = vmatprep.subr.bf16.mxu0 0
    %350 = vmatpush1.bf16.msra.mxu0 %v257
    %351 = vmatprep.subr.bf16.mxu0 0
    %352 = vmatpush1.bf16.msra.mxu0 %v256
    %353 = vmatprep.subr.bf16.mxu0 0
    %354 = vmatpush2.bf16.msra.mxu0 0
    %355 = vmatprep.subr.bf16.mxu0 0
    %356 = vmatpush2.bf16.msra.mxu0 0
    %357 = vmatprep.subr.bf16.mxu0 0
    %358 = vmatpush2.bf16.msra.mxu0 0
    %359 = vmatprep.subr.bf16.mxu0 0
    %360 = vmatpush2.bf16.msra.mxu0 0
    %361 = vmatprep.subr.bf16.mxu0 0
    %362 = vmatpush2.bf16.msra.mxu0 0
    %363 = vmatprep.subr.bf16.mxu0 0
    %364 = vmatpush2.bf16.msra.mxu0 0
    %365 = vmatprep.subr.bf16.mxu0 0
    %366 = vmatpush2.bf16.msra.mxu0 0
    %367 = vmatprep.subr.bf16.mxu0 0
    %368 = vmatpush2.bf16.msra.mxu0 0
    %369 = vmatprep.mubr.bf16.mxu0 0
    %370 = vmatmul.mubr.bf16.gmra.mxu0 %v335
    %v371 = vpop.f32.mrf.mxu0
    %v372 = vadd.f32 0.0, %v371
    %v373 = vpop.f32.mrf.mxu0
    %v374 = vpop.f32.mrf.mxu0
    %v375 = vpop.f32.mrf.mxu0
    %376 = vdwg.mxu0
    %v377 = vadd.f32 %v329, %v372
    %v378 = vxor.u32 %v377, 2147483648
    %v379 = vmul.f32 %v378, 1.442695
    %v380 = vpow.pop %v379
    %v381 = vadd.f32 %v380, 1.0
    %v382 = vrcp.pop %v381
    %v383 = vmul.f32 1.0, %v382
    %v384 = vmul.f32 %v383, 2.0
    %v385 = vsub.f32 %v384, 1.0
    %v386 = vmul.f32 %v383, %v322
    %388 = vrot.lane.b32.xlu0 %v385, 64
    %v389 = vpop.permute.xlu0 %388
    %v391 = vmul.f32 %v383, %v389
    %393 = vrot.lane.b32.xlu0 %v391, 32
    %v394 = vpop.permute.xlu0 %393
    %v396 = vadd.f32 %v386, %v394
    %v397 = vtanh.pop %v396
    %399 = vrot.lane.b32.xlu0 %v397, 64
    %v400 = vpop.permute.xlu0 %399
    %v402 = vmul.f32 %v383, %v400
    %v403 = vld [vmem:[#allocation3 + $0x4] sm:$0x3]
    %v404 = vpack.c.bf16 %v402, %v402
    %406 = vrot.lane.b32.xlu0 %v404, 32
    %v407 = vpop.permute.xlu0 %406
    %v409 = vsel %vm95, %v407, 0
    %411 = vmatprep.subr.bf16.mxu0 0
    %412 = vmatpush1.bf16.msra.mxu0 0
    %413 = vmatprep.subr.bf16.mxu0 0
    %414 = vmatpush1.bf16.msra.mxu0 0
    %415 = vmatprep.subr.bf16.mxu0 0
    %416 = vmatpush1.bf16.msra.mxu0 0
    %417 = vmatprep.subr.bf16.mxu0 0
    %418 = vmatpush1.bf16.msra.mxu0 0
    %419 = vmatprep.subr.bf16.mxu0 0
    %420 = vmatpush1.bf16.msra.mxu0 0
    %421 = vmatprep.subr.bf16.mxu0 0
    %422 = vmatpush1.bf16.msra.mxu0 0
    %423 = vmatprep.subr.bf16.mxu0 0
    %424 = vmatpush1.bf16.msra.mxu0 %v257
    %425 = vmatprep.subr.bf16.mxu0 0
    %426 = vmatpush1.bf16.msra.mxu0 %v256
    %427 = vmatprep.subr.bf16.mxu0 0
    %428 = vmatpush2.bf16.msra.mxu0 0
    %429 = vmatprep.subr.bf16.mxu0 0
    %430 = vmatpush2.bf16.msra.mxu0 0
    %431 = vmatprep.subr.bf16.mxu0 0
    %432 = vmatpush2.bf16.msra.mxu0 0
    %433 = vmatprep.subr.bf16.mxu0 0
    %434 = vmatpush2.bf16.msra.mxu0 0
    %435 = vmatprep.subr.bf16.mxu0 0
    %436 = vmatpush2.bf16.msra.mxu0 0
    %437 = vmatprep.subr.bf16.mxu0 0
    %438 = vmatpush2.bf16.msra.mxu0 0
    %439 = vmatprep.subr.bf16.mxu0 0
    %440 = vmatpush2.bf16.msra.mxu0 0
    %441 = vmatprep.subr.bf16.mxu0 0
    %442 = vmatpush2.bf16.msra.mxu0 0
    %443 = vmatprep.mubr.bf16.mxu0 0
    %444 = vmatmul.mubr.bf16.gmra.mxu0 %v409
    %v445 = vpop.f32.mrf.mxu0
    %v446 = vadd.f32 0.0, %v445
    %v447 = vpop.f32.mrf.mxu0
    %v448 = vpop.f32.mrf.mxu0
    %v449 = vpop.f32.mrf.mxu0
    %450 = vdwg.mxu0
    %v451 = vadd.f32 %v403, %v446
    %v452 = vxor.u32 %v451, 2147483648
    %v453 = vmul.f32 %v452, 1.442695
    %v454 = vpow.pop %v453
    %v455 = vadd.f32 %v454, 1.0
    %v456 = vrcp.pop %v455
    %v457 = vmul.f32 1.0, %v456
    %v458 = vmul.f32 %v457, 2.0
    %v459 = vsub.f32 %v458, 1.0
    %v460 = vmul.f32 %v457, %v396
    %462 = vrot.lane.b32.xlu0 %v459, 64
    %v463 = vpop.permute.xlu0 %462
    %v465 = vmul.f32 %v457, %v463
    %467 = vrot.lane.b32.xlu0 %v465, 32
    %v468 = vpop.permute.xlu0 %467
    %v470 = vadd.f32 %v460, %v468
    %v471 = vtanh.pop %v470
    %473 = vrot.lane.b32.xlu0 %v471, 64
    %v474 = vpop.permute.xlu0 %473
    %v476 = vmul.f32 %v457, %v474
    %v477 = vld [vmem:[#allocation3 + $0x6] sm:$0x3]
    %v478 = vpack.c.bf16 %v476, %v476
    %480 = vrot.lane.b32.xlu0 %v478, 32
    %v481 = vpop.permute.xlu0 %480
    %v483 = vsel %vm95, %v481, 0
    %485 = vmatprep.subr.bf16.mxu0 0
    %486 = vmatpush1.bf16.msra.mxu0 0
    %487 = vmatprep.subr.bf16.mxu0 0
    %488 = vmatpush1.bf16.msra.mxu0 0
    %489 = vmatprep.subr.bf16.mxu0 0
    %490 = vmatpush1.bf16.msra.mxu0 0
    %491 = vmatprep.subr.bf16.mxu0 0
    %492 = vmatpush1.bf16.msra.mxu0 0
    %493 = vmatprep.subr.bf16.mxu0 0
    %494 = vmatpush1.bf16.msra.mxu0 0
    %495 = vmatprep.subr.bf16.mxu0 0
    %496 = vmatpush1.bf16.msra.mxu0 0
    %497 = vmatprep.subr.bf16.mxu0 0
    %498 = vmatpush1.bf16.msra.mxu0 %v257
    %499 = vmatprep.subr.bf16.mxu0 0
    %500 = vmatpush1.bf16.msra.mxu0 %v256
    %501 = vmatprep.subr.bf16.mxu0 0
    %502 = vmatpush2.bf16.msra.mxu0 0
    %503 = vmatprep.subr.bf16.mxu0 0
    %504 = vmatpush2.bf16.msra.mxu0 0
    %505 = vmatprep.subr.bf16.mxu0 0
    %506 = vmatpush2.bf16.msra.mxu0 0
    %507 = vmatprep.subr.bf16.mxu0 0
    %508 = vmatpush2.bf16.msra.mxu0 0
    %509 = vmatprep.subr.bf16.mxu0 0
    %510 = vmatpush2.bf16.msra.mxu0 0
    %511 = vmatprep.subr.bf16.mxu0 0
    %512 = vmatpush2.bf16.msra.mxu0 0
    %513 = vmatprep.subr.bf16.mxu0 0
    %514 = vmatpush2.bf16.msra.mxu0 0
    %515 = vmatprep.subr.bf16.mxu0 0
    %516 = vmatpush2.bf16.msra.mxu0 0
    %517 = vmatprep.mubr.bf16.mxu0 0
    %518 = vmatmul.mubr.bf16.gmra.mxu0 %v483
    %v519 = vpop.f32.mrf.mxu0
    %v520 = vadd.f32 0.0, %v519
    %v521 = vpop.f32.mrf.mxu0
    %v522 = vpop.f32.mrf.mxu0
    %v523 = vpop.f32.mrf.mxu0
    %524 = vdwg.mxu0
    %v525 = vadd.f32 %v477, %v520
    %v526 = vxor.u32 %v525, 2147483648
    %v527 = vmul.f32 %v526, 1.442695
    %v528 = vpow.pop %v527
    %v529 = vadd.f32 %v528, 1.0
    %v530 = vrcp.pop %v529
    %v531 = vmul.f32 1.0, %v530
    %v532 = vmul.f32 %v531, 2.0
    %v533 = vsub.f32 %v532, 1.0
    %v534 = vmul.f32 %v531, %v470
    %536 = vrot.lane.b32.xlu0 %v533, 64
    %v537 = vpop.permute.xlu0 %536
    %v539 = vmul.f32 %v531, %v537
    %541 = vrot.lane.b32.xlu0 %v539, 32
    %v542 = vpop.permute.xlu0 %541
    %v544 = vadd.f32 %v534, %v542
    %v545 = vtanh.pop %v544
    %547 = vrot.lane.b32.xlu0 %v545, 64
    %v548 = vpop.permute.xlu0 %547
    %v550 = vmul.f32 %v531, %v548
    %v551 = vld [vmem:[#allocation3 + $0x8] sm:$0x3]
    %v552 = vpack.c.bf16 %v550, %v550
    %554 = vrot.lane.b32.xlu0 %v552, 32
    %v555 = vpop.permute.xlu0 %554
    %v557 = vsel %vm95, %v555, 0
    %559 = vmatprep.subr.bf16.mxu0 0
    %560 = vmatpush1.bf16.msra.mxu0 0
    %561 = vmatprep.subr.bf16.mxu0 0
    %562 = vmatpush1.bf16.msra.mxu0 0
    %563 = vmatprep.subr.bf16.mxu0 0
    %564 = vmatpush1.bf16.msra.mxu0 0
    %565 = vmatprep.subr.bf16.mxu0 0
    %566 = vmatpush1.bf16.msra.mxu0 0
    %567 = vmatprep.subr.bf16.mxu0 0
    %568 = vmatpush1.bf16.msra.mxu0 0
    %569 = vmatprep.subr.bf16.mxu0 0
    %570 = vmatpush1.bf16.msra.mxu0 0
    %571 = vmatprep.subr.bf16.mxu0 0
    %572 = vmatpush1.bf16.msra.mxu0 %v257
    %573 = vmatprep.subr.bf16.mxu0 0
    %574 = vmatpush1.bf16.msra.mxu0 %v256
    %575 = vmatprep.subr.bf16.mxu0 0
    %576 = vmatpush2.bf16.msra.mxu0 0
    %577 = vmatprep.subr.bf16.mxu0 0
    %578 = vmatpush2.bf16.msra.mxu0 0
    %579 = vmatprep.subr.bf16.mxu0 0
    %580 = vmatpush2.bf16.msra.mxu0 0
    %581 = vmatprep.subr.bf16.mxu0 0
    %582 = vmatpush2.bf16.msra.mxu0 0
    %583 = vmatprep.subr.bf16.mxu0 0
    %584 = vmatpush2.bf16.msra.mxu0 0
    %585 = vmatprep.subr.bf16.mxu0 0
    %586 = vmatpush2.bf16.msra.mxu0 0
    %587 = vmatprep.subr.bf16.mxu0 0
    %588 = vmatpush2.bf16.msra.mxu0 0
    %589 = vmatprep.subr.bf16.mxu0 0
    %590 = vmatpush2.bf16.msra.mxu0 0
    %591 = vmatprep.mubr.bf16.mxu0 0
    %592 = vmatmul.mubr.bf16.gmra.mxu0 %v557
    %v593 = vpop.f32.mrf.mxu0
    %v594 = vadd.f32 0.0, %v593
    %v595 = vpop.f32.mrf.mxu0
    %v596 = vpop.f32.mrf.mxu0
    %v597 = vpop.f32.mrf.mxu0
    %598 = vdwg.mxu0
    %v599 = vadd.f32 %v551, %v594
    %v600 = vxor.u32 %v599, 2147483648
    %v601 = vmul.f32 %v600, 1.442695
    %v602 = vpow.pop %v601
    %v603 = vadd.f32 %v602, 1.0
    %v604 = vrcp.pop %v603
    %v605 = vmul.f32 1.0, %v604
    %v606 = vmul.f32 %v605, 2.0
    %v607 = vsub.f32 %v606, 1.0
    %v608 = vmul.f32 %v605, %v544
    %610 = vrot.lane.b32.xlu0 %v607, 64
    %v611 = vpop.permute.xlu0 %610
    %v613 = vmul.f32 %v605, %v611
    %615 = vrot.lane.b32.xlu0 %v613, 32
    %v616 = vpop.permute.xlu0 %615
    %v618 = vadd.f32 %v608, %v616
    %v619 = vtanh.pop %v618
    %621 = vrot.lane.b32.xlu0 %v619, 64
    %v622 = vpop.permute.xlu0 %621
    %v624 = vmul.f32 %v605, %v622
    %v625 = vld [vmem:[#allocation3 + $0xa] sm:$0x3]
    %v626 = vpack.c.bf16 %v624, %v624
    %628 = vrot.lane.b32.xlu0 %v626, 32
    %v629 = vpop.permute.xlu0 %628
    %v631 = vsel %vm95, %v629, 0
    %633 = vmatprep.subr.bf16.mxu0 0
    %634 = vmatpush1.bf16.msra.mxu0 0
    %635 = vmatprep.subr.bf16.mxu0 0
    %636 = vmatpush1.bf16.msra.mxu0 0
    %637 = vmatprep.subr.bf16.mxu0 0
    %638 = vmatpush1.bf16.msra.mxu0 0
    %639 = vmatprep.subr.bf16.mxu0 0
    %640 = vmatpush1.bf16.msra.mxu0 0
    %641 = vmatprep.subr.bf16.mxu0 0
    %642 = vmatpush1.bf16.msra.mxu0 0
    %643 = vmatprep.subr.bf16.mxu0 0
    %644 = vmatpush1.bf16.msra.mxu0 0
    %645 = vmatprep.subr.bf16.mxu0 0
    %646 = vmatpush1.bf16.msra.mxu0 %v257
    %647 = vmatprep.subr.bf16.mxu0 0
    %648 = vmatpush1.bf16.msra.mxu0 %v256
    %649 = vmatprep.subr.bf16.mxu0 0
    %650 = vmatpush2.bf16.msra.mxu0 0
    %651 = vmatprep.subr.bf16.mxu0 0
    %652 = vmatpush2.bf16.msra.mxu0 0
    %653 = vmatprep.subr.bf16.mxu0 0
    %654 = vmatpush2.bf16.msra.mxu0 0
    %655 = vmatprep.subr.bf16.mxu0 0
    %656 = vmatpush2.bf16.msra.mxu0 0
    %657 = vmatprep.subr.bf16.mxu0 0
    %658 = vmatpush2.bf16.msra.mxu0 0
    %659 = vmatprep.subr.bf16.mxu0 0
    %660 = vmatpush2.bf16.msra.mxu0 0
    %661 = vmatprep.subr.bf16.mxu0 0
    %662 = vmatpush2.bf16.msra.mxu0 0
    %663 = vmatprep.subr.bf16.mxu0 0
    %664 = vmatpush2.bf16.msra.mxu0 0
    %665 = vmatprep.mubr.bf16.mxu0 0
    %666 = vmatmul.mubr.bf16.gmra.mxu0 %v631
    %v667 = vpop.f32.mrf.mxu0
    %v668 = vadd.f32 0.0, %v667
    %v669 = vpop.f32.mrf.mxu0
    %v670 = vpop.f32.mrf.mxu0
    %v671 = vpop.f32.mrf.mxu0
    %672 = vdwg.mxu0
    %v673 = vadd.f32 %v625, %v668
    %v674 = vxor.u32 %v673, 2147483648
    %v675 = vmul.f32 %v674, 1.442695
    %v676 = vpow.pop %v675
    %v677 = vadd.f32 %v676, 1.0
    %v678 = vrcp.pop %v677
    %v679 = vmul.f32 1.0, %v678
    %v680 = vmul.f32 %v679, 2.0
    %v681 = vsub.f32 %v680, 1.0
    %v682 = vmul.f32 %v679, %v618
    %684 = vrot.lane.b32.xlu0 %v681, 64
    %v685 = vpop.permute.xlu0 %684
    %v687 = vmul.f32 %v679, %v685
    %689 = vrot.lane.b32.xlu0 %v687, 32
    %v690 = vpop.permute.xlu0 %689
    %v692 = vadd.f32 %v682, %v690
    %v693 = vtanh.pop %v692
    %695 = vrot.lane.b32.xlu0 %v693, 64
    %v696 = vpop.permute.xlu0 %695
    %v698 = vmul.f32 %v679, %v696
    %v699 = vld [vmem:[#allocation3 + $0xc] sm:$0x3]
    %v700 = vpack.c.bf16 %v698, %v698
    %702 = vrot.lane.b32.xlu0 %v700, 32
    %v703 = vpop.permute.xlu0 %702
    %v705 = vsel %vm95, %v703, 0
    %707 = vmatprep.subr.bf16.mxu0 0
    %708 = vmatpush1.bf16.msra.mxu0 0
    %709 = vmatprep.subr.bf16.mxu0 0
    %710 = vmatpush1.bf16.msra.mxu0 0
    %711 = vmatprep.subr.bf16.mxu0 0
    %712 = vmatpush1.bf16.msra.mxu0 0
    %713 = vmatprep.subr.bf16.mxu0 0
    %714 = vmatpush1.bf16.msra.mxu0 0
    %715 = vmatprep.subr.bf16.mxu0 0
    %716 = vmatpush1.bf16.msra.mxu0 0
    %717 = vmatprep.subr.bf16.mxu0 0
    %718 = vmatpush1.bf16.msra.mxu0 0
    %719 = vmatprep.subr.bf16.mxu0 0
    %720 = vmatpush1.bf16.msra.mxu0 %v257
    %721 = vmatprep.subr.bf16.mxu0 0
    %722 = vmatpush1.bf16.msra.mxu0 %v256
    %723 = vmatprep.subr.bf16.mxu0 0
    %724 = vmatpush2.bf16.msra.mxu0 0
    %725 = vmatprep.subr.bf16.mxu0 0
    %726 = vmatpush2.bf16.msra.mxu0 0
    %727 = vmatprep.subr.bf16.mxu0 0
    %728 = vmatpush2.bf16.msra.mxu0 0
    %729 = vmatprep.subr.bf16.mxu0 0
    %730 = vmatpush2.bf16.msra.mxu0 0
    %731 = vmatprep.subr.bf16.mxu0 0
    %732 = vmatpush2.bf16.msra.mxu0 0
    %733 = vmatprep.subr.bf16.mxu0 0
    %734 = vmatpush2.bf16.msra.mxu0 0
    %735 = vmatprep.subr.bf16.mxu0 0
    %736 = vmatpush2.bf16.msra.mxu0 0
    %737 = vmatprep.subr.bf16.mxu0 0
    %738 = vmatpush2.bf16.msra.mxu0 0
    %739 = vmatprep.mubr.bf16.mxu0 0
    %740 = vmatmul.mubr.bf16.gmra.mxu0 %v705
    %v741 = vpop.f32.mrf.mxu0
    %v742 = vadd.f32 0.0, %v741
    %v743 = vpop.f32.mrf.mxu0
    %v744 = vpop.f32.mrf.mxu0
    %v745 = vpop.f32.mrf.mxu0
    %746 = vdwg.mxu0
    %v747 = vadd.f32 %v699, %v742
    %v748 = vxor.u32 %v747, 2147483648
    %v749 = vmul.f32 %v748, 1.442695
    %v750 = vpow.pop %v749
    %v751 = vadd.f32 %v750, 1.0
    %v752 = vrcp.pop %v751
    %v753 = vmul.f32 1.0, %v752
    %v754 = vmul.f32 %v753, 2.0
    %v755 = vsub.f32 %v754, 1.0
    %v756 = vmul.f32 %v753, %v692
    %758 = vrot.lane.b32.xlu0 %v755, 64
    %v759 = vpop.permute.xlu0 %758
    %v761 = vmul.f32 %v753, %v759
    %763 = vrot.lane.b32.xlu0 %v761, 32
    %v764 = vpop.permute.xlu0 %763
    %v766 = vadd.f32 %v756, %v764
    %v767 = vtanh.pop %v766
    %769 = vrot.lane.b32.xlu0 %v767, 64
    %v770 = vpop.permute.xlu0 %769
    %v772 = vmul.f32 %v753, %v770
    %v773 = vld [vmem:[#allocation3 + $0xe] sm:$0x3]
    %v774 = vpack.c.bf16 %v772, %v772
    %776 = vrot.lane.b32.xlu0 %v774, 32
    %v777 = vpop.permute.xlu0 %776
    %v779 = vsel %vm95, %v777, 0
    %781 = vmatprep.subr.bf16.mxu0 0
    %782 = vmatpush1.bf16.msra.mxu0 0
    %783 = vmatprep.subr.bf16.mxu0 0
    %784 = vmatpush1.bf16.msra.mxu0 0
    %785 = vmatprep.subr.bf16.mxu0 0
    %786 = vmatpush1.bf16.msra.mxu0 0
    %787 = vmatprep.subr.bf16.mxu0 0
    %788 = vmatpush1.bf16.msra.mxu0 0
    %789 = vmatprep.subr.bf16.mxu0 0
    %790 = vmatpush1.bf16.msra.mxu0 0
    %791 = vmatprep.subr.bf16.mxu0 0
    %792 = vmatpush1.bf16.msra.mxu0 0
    %793 = vmatprep.subr.bf16.mxu0 0
    %794 = vmatpush1.bf16.msra.mxu0 %v257
    %795 = vmatprep.subr.bf16.mxu0 0
    %796 = vmatpush1.bf16.msra.mxu0 %v256
    %797 = vmatprep.subr.bf16.mxu0 0
    %798 = vmatpush2.bf16.msra.mxu0 0
    %799 = vmatprep.subr.bf16.mxu0 0
    %800 = vmatpush2.bf16.msra.mxu0 0
    %801 = vmatprep.subr.bf16.mxu0 0
    %802 = vmatpush2.bf16.msra.mxu0 0
    %803 = vmatprep.subr.bf16.mxu0 0
    %804 = vmatpush2.bf16.msra.mxu0 0
    %805 = vmatprep.subr.bf16.mxu0 0
    %806 = vmatpush2.bf16.msra.mxu0 0
    %807 = vmatprep.subr.bf16.mxu0 0
    %808 = vmatpush2.bf16.msra.mxu0 0
    %809 = vmatprep.subr.bf16.mxu0 0
    %810 = vmatpush2.bf16.msra.mxu0 0
    %811 = vmatprep.subr.bf16.mxu0 0
    %812 = vmatpush2.bf16.msra.mxu0 0
    %813 = vmatprep.mubr.bf16.mxu0 0
    %814 = vmatmul.mubr.bf16.gmra.mxu0 %v779
    %v815 = vpop.f32.mrf.mxu0
    %v816 = vadd.f32 0.0, %v815
    %v817 = vpop.f32.mrf.mxu0
    %v818 = vpop.f32.mrf.mxu0
    %v819 = vpop.f32.mrf.mxu0
    %820 = vdwg.mxu0
    %v821 = vadd.f32 %v773, %v816
    %v822 = vxor.u32 %v821, 2147483648
    %v823 = vmul.f32 %v822, 1.442695
    %v824 = vpow.pop %v823
    %v825 = vadd.f32 %v824, 1.0
    %v826 = vrcp.pop %v825
    %v827 = vmul.f32 1.0, %v826
    %v828 = vmul.f32 %v827, 2.0
    %v829 = vsub.f32 %v828, 1.0
    %v830 = vmul.f32 %v827, %v766
    %832 = vrot.lane.b32.xlu0 %v829, 64
    %v833 = vpop.permute.xlu0 %832
    %v835 = vmul.f32 %v827, %v833
    %837 = vrot.lane.b32.xlu0 %v835, 32
    %v838 = vpop.permute.xlu0 %837
    %v840 = vadd.f32 %v830, %v838
    %v841 = vtanh.pop %v840
    %843 = vrot.lane.b32.xlu0 %v841, 64
    %v844 = vpop.permute.xlu0 %843
    %v846 = vmul.f32 %v827, %v844
    %v847 = vld [vmem:[%s5] sm:$0x1]
    %v849 = vlaneseq
    %v850 = vshrl.u32 %v849, 7
    %v851 = vsub.s32 0, %v850
    %v852 = vrot.slane %v847, %v851
    %853 = vrot.lane.b32.xlu0 %v852, 96
    %v854 = vpop.permute.xlu0 %853
    %v856 = vmul.f32 %v846, %v854
    %858 = vrot.lane.b32.xlu0 %v856, 32
    %v859 = vpop.permute.xlu0 %858
    %vm861 = vcmask 254976
    %v862 = vsel %vm861, %v859, 0.0
    %863 = vadd.xlane.f32.xlu0 %v862
    %v864 = vpop.xlane.xlu0 %863
    %s865 = sld [smem:[#allocation4]]
    %v866 = vstv %s865
    %v867 = vadd.f32 %v864, %v866
    %v868 = vxor.u32 %v867, 2147483648
    %v869 = vmul.f32 %v868, 1.442695
    %v870 = vpow.pop %v869
    %v871 = vadd.f32 %v870, 1.0
    %v872 = vrcp.pop %v871
    %v873 = vmul.f32 1.0, %v872
    %vm874 = vcmask 1024
    %875 = vst.msk [vmem:[%s7] sm:$0x3] %vm874, %v873
    // Predicated region
    $region46: #{tpu_custom_call.1} parent=1 // pred_check
      _
    $region47: #{tpu_custom_call.1} parent=1 // pred_check_branch
      %877 = sbr.rel (0) target = $region49
    $region48: #{tpu_custom_call.1} parent=1 // pred_region
      _
    $region49: #{tpu_custom_call.1} parent=1 // pred_fallthru
      _
    // Predicated region
    $region50: #{tpu_custom_call.1} parent=1 // pred_check
      _
    $region51: #{tpu_custom_call.1} parent=1 // pred_check_branch
      %879 = sbr.rel (0) target = $region53
    $region52: #{tpu_custom_call.1} parent=1 // pred_region
      _
    $region53: #{tpu_custom_call.1} parent=1 // pred_fallthru
      _
    %880 = vsyncpa [#allocation6], 1
    %881 = vsyncpa [#allocation10], 1
    %882 = vsyncpa [#allocation7], 1

</llo_original>
